<compile_context>
chip_gen: v6e
topology: v6e:2x2x1
jax: 0.10.0
libtpu: 0.0.40
codegen_flags: <defaults>
</compile_context>

<pallas_src>
import functools

import numpy as np

import jax
import jax.numpy as jnp
from jax import lax
from jax.experimental import pallas as pl
from jax.experimental.pallas import tpu as pltpu

ALPHA = 1.0
GAMMA = 2                  # integer exponent -> repeated multiply in-kernel
LABEL_SMOOTHING = 0.1      # Config.LABEL_SMOOTHING
LANES = 128                # vreg lane width (same on v5e/v6e/v7x)


def _ceil_to(x, m):
    return ((x + m - 1) // m) * m


def _num_partials(override=None):
    """Leading 'parallel' grid axis: 2 only on v7x (2 TensorCores per chip)."""
    if override is not None:
        return max(1, int(override))
    try:
        dev = jax.devices()[0]
        if dev.platform != "tpu":
            return 1
        kind = dev.device_kind.lower()
    except Exception:  # pragma: no cover - conservative default
        return 1
    return 2 if ("v7" in kind or "7x" in kind) else 1


def _default_row_block(itemsize):
    # ~1 MiB logits block (= 65536 samples for C=4 f32): review item -- the old
    # 8K-sample cap left the ~0.35us/step pipeline overhead dominant.  The f32
    # temporaries at this size stay well inside the 32 MiB VMEM request.
    target_bytes = 1 << 20
    r = target_bytes // (LANES * max(1, int(itemsize)))
    return int(max(64, min(2048, (r // 8) * 8)))


def _const_stacks(num_classes, class_weights):
    """Small resident constants:
       pstack (bf16): XOR-partner permutation matrices for the max butterfly.
       gstack (f32):  [group-sum matrix A | target-expansion matrix E (padded)
                       | smoothed weight row | full (target) weight row]."""
    lane = np.arange(LANES)
    grp = lane // num_classes
    spc = LANES // num_classes

    p_list = []
    shift = 1
    while shift < num_classes:
        p_list.append(((lane[:, None] ^ shift) == lane[None, :]).astype(np.float32))
        shift *= 2
    pstack = jnp.asarray(np.concatenate(p_list, axis=0), dtype=jnp.bfloat16)

    a_mat = (grp[:, None] == grp[None, :]).astype(np.float32)          # (128, 128)
    e_rows = _ceil_to(spc, 8)
    e_mat = np.zeros((e_rows, LANES), np.float32)
    e_mat[:spc] = (np.arange(spc)[:, None] == grp[None, :]).astype(np.float32)

    eps = LABEL_SMOOTHING
    w_lane = class_weights.astype(jnp.float32)[lane % num_classes]     # (128,)
    w_smooth = (eps / num_classes) * w_lane
    w_full = (1.0 - eps + eps / num_classes) * w_lane
    gstack = jnp.concatenate(
        [jnp.asarray(np.concatenate([a_mat, e_mat], axis=0)),
         w_smooth[None, :], w_full[None, :]], axis=0)                  # (128+e_rows+2, 128)
    return pstack, gstack


def _focal_loss_kernel(nrows_ref, logits_ref, targets_ref, pstack_ref,
                       gstack_ref, out_ref, acc_ref, *, num_classes):
    par = pl.program_id(0)
    step = pl.program_id(1)
    n_steps = pl.num_programs(1)

    @pl.when(step == 0)
    def _init():
        acc_ref[...] = jnp.zeros_like(acc_ref)

    z = logits_ref[...].astype(jnp.float32)                 # (R, 128) interleaved
    r = z.shape[0]
    spc = LANES // num_classes
    e_rows = _ceil_to(spc, 8)

    # ---- per-sample max over the C class lanes of each sample.
    # XOR-partner exchange done as exact 0/1 permutation matmuls in bf16 on the
    # otherwise idle MXU.  Every lane of a sample sees the same bf16 values, so
    # the max is group-consistent and the f32 logsumexp below is unaffected by
    # the bf16 rounding of m (lse is invariant to the shift).
    m = z.astype(jnp.bfloat16).astype(jnp.float32)
    stage = 0
    shift = 1
    while shift < num_classes:
        p_mat = pstack_ref[stage * LANES:(stage + 1) * LANES, :]       # (128,128) bf16
        partner = jnp.dot(m.astype(jnp.bfloat16), p_mat,
                          preferred_element_type=jnp.float32)
        m = jnp.maximum(m, partner)
        stage += 1
        shift *= 2

    a_mat = gstack_ref[0:LANES, :]                                     # (128,128) f32
    e_mat = gstack_ref[LANES:LANES + spc, :]                           # (spc,128) f32
    wrow = gstack_ref[LANES + e_rows:LANES + e_rows + 2, :]            # (2,128) f32
    w_smooth = jnp.broadcast_to(wrow[0:1, :], (r, LANES))
    w_full = jnp.broadcast_to(wrow[1:2, :], (r, LANES))

    # ---- numerically stable log-softmax denominator, broadcast to each
    # sample's C lanes by the group-sum matmul.
    expz = jnp.exp(z - m)
    denom = jnp.dot(expz, a_mat, preferred_element_type=jnp.float32)
    lse = m + jnp.log(denom)

    # ---- label-smoothed, class-weighted coefficient per lane; weights folded
    # into the select (review item: no separate one-hot / weight multiply).
    t_lane = jnp.dot(targets_ref[...].astype(jnp.float32), e_mat,
                     preferred_element_type=jnp.float32)               # (R,128)
    lane = lax.broadcasted_iota(jnp.int32, (r, LANES), 1)
    cls = (lane & (num_classes - 1)).astype(jnp.float32)
    coeff = jnp.where(cls == t_lane, w_full, w_smooth)

    # ce_i = sum_c coeff_c * (lse_i - z_c): the lse is folded per lane so the
    # whole CE needs a single group reduction (one matmul instead of two).
    ce = jnp.dot(coeff * (lse - z), a_mat, preferred_element_type=jnp.float32)

    # ---- focal modulation (gamma == 2 -> repeated multiply, no pow).
    pt = jnp.exp(-ce)
    one_minus_pt = 1.0 - pt
    focal = (ALPHA * one_minus_pt) * one_minus_pt * ce

    # Rows in block padding or in clamped duplicate blocks contribute nothing.
    # jnp.where is a true select, so NaN/Inf from padded garbage never
    # propagates into the sum.
    rows_valid = nrows_ref[0]
    row0 = (par * n_steps + step) * r
    row_idx = row0 + lax.broadcasted_iota(jnp.int32, (r, 1), 0)
    focal = jnp.where(row_idx < rows_valid, focal, 0.0)

    # Per-lane accumulator (review item): VPU adds only; the single cross-lane
    # reduction happens outside the kernel.
    acc_ref[...] += jnp.sum(focal, axis=0, keepdims=True)

    @pl.when(step == n_steps - 1)
    def _finalize():
        out_ref[...] = jnp.broadcast_to(acc_ref[...].reshape(1, 1, LANES),
                                        out_ref.shape)


def focal_loss_ref(logits, targets, class_weights):
    """Pure-JAX reference mirroring torch.nn.functional.cross_entropy semantics."""
    _, c = logits.shape
    logp = jax.nn.log_softmax(logits.astype(jnp.float32), axis=-1)
    w = class_weights.astype(jnp.float32)
    onehot = jax.nn.one_hot(targets, c, dtype=jnp.float32)
    nll = -jnp.sum(onehot * logp * w[None, :], axis=-1)
    smooth = -jnp.sum(logp * w[None, :], axis=-1)
    eps = LABEL_SMOOTHING
    ce = (1.0 - eps) * nll + (eps / c) * smooth
    pt = jnp.exp(-ce)
    focal = ALPHA * (1.0 - pt) ** GAMMA * ce
    return jnp.mean(focal)


def focal_loss(logits, targets, class_weights=None, *, row_block=None,
               n_partials=None, min_pallas_batch=4096):
    """logits: (N, C) float (f32 or bf16); targets: (N,) int; class_weights: (C,)."""
    if class_weights is None:
        class_weights = jnp.array([1.0, 1.0, 3.0, 1.0], dtype=jnp.float32)
    n, c = logits.shape

    pow2 = (c >= 2) and (c <= LANES) and ((c & (c - 1)) == 0)
    spc = LANES // c if pow2 else 0
    if (not pow2) or (n < min_pallas_batch) or (n % spc != 0):
        # Review item: tiny batches (the module's BATCH_SIZE=8) are pure launch
        # overhead in a kernel -- XLA's fusion of this memory-bound loss is
        # already near-roofline.  Batches that aren't a multiple of 128//C
        # can't be viewed as a lane-packed (rows, 128) array without an HBM
        # copy that would cost as much as the transpose we removed, so they
        # take the same fused XLA path.
        # TODO(synk): pad such batches at the data-pipeline level if they ever
        # matter at scale.
        return focal_loss_ref(logits, targets, class_weights)

    rows = n // spc
    # Zero-copy views (row-major reshape == bitcast): (N, C) -> (rows, 128)
    # class-interleaved logits, (N,) -> (rows, spc) targets.  No logits.T, no
    # f32 up-cast here: the kernel streams the native dtype.
    logits_rows = logits.reshape(rows, LANES)
    targets_rows = targets.astype(jnp.int32).reshape(rows, spc)

    itemsize = jnp.dtype(logits.dtype).itemsize
    rb = int(row_block) if row_block is not None else _default_row_block(itemsize)
    if rb >= rows:
        rb = rows
    else:
        rb = max(8, (rb // 8) * 8)

    n_blocks = pl.cdiv(rows, rb)
    npart = max(1, min(_num_partials(n_partials), n_blocks))
    n_steps = pl.cdiv(n_blocks, npart)

    pstack, gstack = _const_stacks(c, class_weights)
    rows_smem = jnp.array([rows], dtype=jnp.int32)

    def blk(par, step):
        # Clamp so the (possibly empty) tail of the last partial stays in
        # bounds; its rows are masked inside the kernel.
        return jnp.minimum(par * n_steps + step, n_blocks - 1)

    grid_spec = pltpu.PrefetchScalarGridSpec(
        num_scalar_prefetch=1,
        grid=(npart, n_steps),
        in_specs=[
            pl.BlockSpec((rb, LANES), lambda par, step, nr: (blk(par, step), 0)),
            pl.BlockSpec((rb, spc), lambda par, step, nr: (blk(par, step), 0)),
            pl.BlockSpec(tuple(pstack.shape), lambda par, step, nr: (0, 0)),
            pl.BlockSpec(tuple(gstack.shape), lambda par, step, nr: (0, 0)),
        ],
        out_specs=pl.BlockSpec((1, 8, LANES), lambda par, step, nr: (par, 0, 0)),
        scratch_shapes=[pltpu.VMEM((1, LANES), jnp.float32)],
    )

    partials = pl.pallas_call(
        functools.partial(_focal_loss_kernel, num_classes=c),
        grid_spec=grid_spec,
        out_shape=jax.ShapeDtypeStruct((npart, 8, LANES), jnp.float32),
        compiler_params=pltpu.CompilerParams(
            dimension_semantics=("parallel", "arbitrary"),
            vmem_limit_bytes=32 * 1024 * 1024,
        ),
    )(rows_smem, logits_rows, targets_rows, pstack, gstack)

    # Each sample's focal value is replicated across its C lanes; fold the 1/C
    # into the final mean and multiply by the reciprocal instead of dividing.
    return jnp.sum(partials[:, 0, :]) * (1.0 / (n * c))


if __name__ == "__main__":
    key = jax.random.PRNGKey(0)
    k = jax.random.split(key, 8)
    class_weights = jnp.array([1.0, 1.0, 3.0, 1.0], dtype=jnp.float32)
    c = 4

    # 1) The module's own shape (Config.BATCH_SIZE = 8, 4 classes): dispatched
    #    to the fused XLA path by design (launch overhead can't be amortized).
    logits8 = jax.random.normal(k[0], (8, c), jnp.float32) * 2.0
    targets8 = jax.random.randint(k[1], (8,), 0, c, dtype=jnp.int32)
    out8 = focal_loss(logits8, targets8, class_weights)
    ref8 = focal_loss_ref(logits8, targets8, class_weights)
    assert jnp.allclose(out8, ref8, rtol=1e-5, atol=1e-6), (out8, ref8)

    # 2) Pallas path: f32 logits, single row-block.
    n = 4096
    logits = jax.random.normal(k[2], (n, c), jnp.float32) * 2.0
    targets = jax.random.randint(k[3], (n,), 0, c, dtype=jnp.int32)
    out = focal_loss(logits, targets, class_weights)
    jax.block_until_ready(out)
    ref = focal_loss_ref(logits, targets, class_weights)
    assert jnp.allclose(out, ref, rtol=5e-3, atol=1e-5), (out, ref)

    # 3) Pallas path: bf16 logits streamed natively, multi-block with a partial
    #    tail block and a forced second partial (odd block count -> the clamped
    #    duplicate block must be fully masked out).
    n = 6400
    logits_bf = (jax.random.normal(k[4], (n, c), jnp.float32) * 2.0
                 ).astype(jnp.bfloat16)
    targets_bf = jax.random.randint(k[5], (n,), 0, c, dtype=jnp.int32)
    out_bf = focal_loss(logits_bf, targets_bf, class_weights,
                        row_block=96, n_partials=2)
    jax.block_until_ready(out_bf)
    ref_bf = focal_loss_ref(logits_bf, targets_bf, class_weights)
    assert jnp.allclose(out_bf, ref_bf, rtol=5e-3, atol=1e-5), (out_bf, ref_bf)

    # 4) Batch that is not a multiple of 128//C: documented fallback path.
    n = 4100
    logits_o = jax.random.normal(k[6], (n, c), jnp.float32) * 2.0
    targets_o = jax.random.randint(k[7], (n,), 0, c, dtype=jnp.int32)
    out_o = focal_loss(logits_o, targets_o, class_weights)
    ref_o = focal_loss_ref(logits_o, targets_o, class_weights)
    assert jnp.allclose(out_o, ref_o, rtol=1e-5, atol=1e-6), (out_o, ref_o)

    print("KERNEL_OK")
</pallas_src>

<mosaic_0001>
module attributes {stable_mosaic.version = 11 : i64} {
  func.func @_focal_loss_kernel(%arg0: i32, %arg1: i32, %arg2: memref<1xi32, #tpu.memory_space<smem>>, %arg3: memref<128x128xf32, #tpu.memory_space<vmem>>, %arg4: memref<128x32xi32, #tpu.memory_space<vmem>>, %arg5: memref<256x128xbf16, #tpu.memory_space<vmem>>, %arg6: memref<162x128xf32, #tpu.memory_space<vmem>>, %arg7: memref<1x8x128xf32, #tpu.memory_space<vmem>>, %arg8: memref<1x128xf32, #tpu.memory_space<vmem>>) attributes {dimension_semantics = [#tpu.dimension_semantics<parallel>, #tpu.dimension_semantics<arbitrary>], iteration_bounds = array<i64: 1, 1>, scalar_prefetch = 1 : i64, scratch_operands = 1 : i64, tpu.core_type = #tpu.core_type<tc>, window_params = [{transform_indices = @transform_0, window_bounds = array<i64: 128, 128>}, {transform_indices = @transform_1, window_bounds = array<i64: 128, 32>}, {pipeline_mode = #tpu.pipeline_mode<synchronous>, transform_indices = @transform_2, window_bounds = array<i64: 256, 128>}, {pipeline_mode = #tpu.pipeline_mode<synchronous>, transform_indices = @transform_3, window_bounds = array<i64: 162, 128>}, {transform_indices = @transform_4, window_bounds = array<i64: 1, 8, 128>}]} {
    %c0_i32 = arith.constant 0 : i32
    %0 = arith.cmpi eq, %arg1, %c0_i32 : i32
    %1 = arith.extui %0 : i1 to i32
    %c0_i32_0 = arith.constant 0 : i32
    %2 = arith.cmpi ne, %1, %c0_i32_0 : i32
    scf.if %2 {
      %cst_28 = arith.constant 0.000000e+00 : f32
      %70 = vector.broadcast %cst_28 : f32 to vector<1x128xf32>
      %c0_29 = arith.constant 0 : index
      %c0_30 = arith.constant 0 : index
      %71 = vector.load %arg8[%c0_29, %c0_30] : memref<1x128xf32, #tpu.memory_space<vmem>>, vector<1x128xf32>
      tpu.vector_store %arg8[%c0_29, %c0_30], %70 {strides = array<i32>} : memref<1x128xf32, #tpu.memory_space<vmem>>, vector<1x128xf32>,
    } else {
    }
    %c0 = arith.constant 0 : index
    %c0_1 = arith.constant 0 : index
    %3 = vector.load %arg3[%c0, %c0_1] : memref<128x128xf32, #tpu.memory_space<vmem>>, vector<128x128xf32>
    %4 = arith.truncf %3 : vector<128x128xf32> to vector<128x128xbf16>
    %5 = arith.extf %4 : vector<128x128xbf16> to vector<128x128xf32>
    %c0_2 = arith.constant 0 : index
    %c0_3 = arith.constant 0 : index
    %6 = vector.load %arg5[%c0_2, %c0_3] : memref<256x128xbf16, #tpu.memory_space<vmem>>, vector<128x128xbf16>
    %7 = arith.truncf %5 : vector<128x128xf32> to vector<128x128xbf16>
    %cst = arith.constant dense<0.000000e+00> : vector<128x128xf32>
    %8 = tpu.matmul %7, %6, %cst {dimension_numbers = #tpu.dot_dimension_numbers<[1], [0], [0], [1], [0, 0, 1, 1], [], []>} : vector<128x128xbf16>, vector<128x128xbf16>, vector<128x128xf32> -> vector<128x128xf32>
    %9 = arith.maximumf %5, %8 : vector<128x128xf32>
    %c128 = arith.constant 128 : index
    %c0_4 = arith.constant 0 : index
    %10 = vector.load %arg5[%c128, %c0_4] : memref<256x128xbf16, #tpu.memory_space<vmem>>, vector<128x128xbf16>
    %11 = arith.truncf %9 : vector<128x128xf32> to vector<128x128xbf16>
    %cst_5 = arith.constant dense<0.000000e+00> : vector<128x128xf32>
    %12 = tpu.matmul %11, %10, %cst_5 {dimension_numbers = #tpu.dot_dimension_numbers<[1], [0], [0], [1], [0, 0, 1, 1], [], []>} : vector<128x128xbf16>, vector<128x128xbf16>, vector<128x128xf32> -> vector<128x128xf32>
    %13 = arith.maximumf %9, %12 : vector<128x128xf32>
    %c0_6 = arith.constant 0 : index
    %c0_7 = arith.constant 0 : index
    %14 = vector.load %arg6[%c0_6, %c0_7] : memref<162x128xf32, #tpu.memory_space<vmem>>, vector<128x128xf32>
    %c128_8 = arith.constant 128 : index
    %c0_9 = arith.constant 0 : index
    %15 = vector.load %arg6[%c128_8, %c0_9] : memref<162x128xf32, #tpu.memory_space<vmem>>, vector<32x128xf32>
    %c160 = arith.constant 160 : index
    %c0_10 = arith.constant 0 : index
    %16 = vector.load %arg6[%c160, %c0_10] : memref<162x128xf32, #tpu.memory_space<vmem>>, vector<2x128xf32>
    %17 = vector.extract_strided_slice %16 {offsets = [0, 0], sizes = [1, 128], strides = [1, 1]} : vector<2x128xf32> to vector<1x128xf32>
    %18 = vector.shape_cast %17 : vector<1x128xf32> to vector<1x128xf32>
    %19 = vector.broadcast %18 : vector<1x128xf32> to vector<128x128xf32>
    %20 = vector.extract_strided_slice %16 {offsets = [1, 0], sizes = [1, 128], strides = [1, 1]} : vector<2x128xf32> to vector<1x128xf32>
    %21 = vector.shape_cast %20 : vector<1x128xf32> to vector<1x128xf32>
    %22 = vector.broadcast %21 : vector<1x128xf32> to vector<128x128xf32>
    %23 = arith.subf %3, %13 : vector<128x128xf32>
    %24 = math.exp %23 : vector<128x128xf32>
    %cst_11 = arith.constant dense<0.000000e+00> : vector<128x128xf32>
    %25 = tpu.matmul %24, %14, %cst_11 {dimension_numbers = #tpu.dot_dimension_numbers<[1], [0], [0], [1], [0, 0, 1, 1], [], []>} : vector<128x128xf32>, vector<128x128xf32>, vector<128x128xf32> -> vector<128x128xf32>
    %26 = math.log %25 : vector<128x128xf32>
    %27 = arith.addf %13, %26 : vector<128x128xf32>
    %c0_12 = arith.constant 0 : index
    %c0_13 = arith.constant 0 : index
    %28 = vector.load %arg4[%c0_12, %c0_13] : memref<128x32xi32, #tpu.memory_space<vmem>>, vector<128x32xi32>
    %29 = arith.sitofp %28 : vector<128x32xi32> to vector<128x32xf32>
    %cst_14 = arith.constant dense<0.000000e+00> : vector<128x128xf32>
    %30 = tpu.matmul %29, %15, %cst_14 {dimension_numbers = #tpu.dot_dimension_numbers<[1], [0], [0], [1], [0, 0, 1, 1], [], []>} : vector<128x32xf32>, vector<32x128xf32>, vector<128x128xf32> -> vector<128x128xf32>
    %31 = tpu.iota {dimensions = array<i32: 1>} : vector<128x128xi32>
    %c3_i32 = arith.constant 3 : i32
    %32 = vector.broadcast %c3_i32 : i32 to vector<128x128xi32>
    %33 = arith.andi %31, %32 : vector<128x128xi32>
    %34 = arith.sitofp %33 : vector<128x128xi32> to vector<128x128xf32>
    %35 = arith.cmpf oeq, %34, %30 : vector<128x128xf32>
    %36 = arith.select %35, %22, %19 : vector<128x128xi1>, vector<128x128xf32>
    %37 = arith.subf %27, %3 : vector<128x128xf32>
    %38 = arith.mulf %36, %37 : vector<128x128xf32>
    %cst_15 = arith.constant dense<0.000000e+00> : vector<128x128xf32>
    %39 = tpu.matmul %38, %14, %cst_15 {dimension_numbers = #tpu.dot_dimension_numbers<[1], [0], [0], [1], [0, 0, 1, 1], [], []>} : vector<128x128xf32>, vector<128x128xf32>, vector<128x128xf32> -> vector<128x128xf32>
    %cst_16 = arith.constant 0.000000e+00 : f32
    %40 = vector.broadcast %cst_16 : f32 to vector<128x128xf32>
    %41 = arith.subf %40, %39 : vector<128x128xf32>
    %42 = math.exp %41 : vector<128x128xf32>
    %cst_17 = arith.constant 1.000000e+00 : f32
    %43 = vector.broadcast %cst_17 : f32 to vector<128x128xf32>
    %44 = arith.subf %43, %42 : vector<128x128xf32>
    %cst_18 = arith.constant 1.000000e+00 : f32
    %45 = vector.broadcast %cst_18 : f32 to vector<128x128xf32>
    %46 = arith.mulf %45, %44 : vector<128x128xf32>
    %47 = arith.mulf %46, %44 : vector<128x128xf32>
    %48 = arith.mulf %47, %39 : vector<128x128xf32>
    %c0_19 = arith.constant 0 : index
    %49 = memref.load %arg2[%c0_19] : memref<1xi32, #tpu.memory_space<smem>>
    %c1_i32 = arith.constant 1 : i32
    %50 = arith.muli %arg0, %c1_i32 : i32
    %51 = arith.addi %50, %arg1 : i32
    %c128_i32 = arith.constant 128 : i32
    %52 = arith.muli %51, %c128_i32 : i32
    %53 = tpu.iota {dimensions = array<i32: 0>} : vector<128x1xi32>
    %54 = vector.broadcast %52 : i32 to vector<128x1xi32>
    %55 = arith.addi %54, %53 : vector<128x1xi32>
    %56 = vector.broadcast %49 : i32 to vector<128x1xi32>
    %57 = arith.cmpi slt, %55, %56 : vector<128x1xi32>
    %cst_20 = arith.constant 0.000000e+00 : f32
    %58 = vector.shape_cast %57 : vector<128x1xi1> to vector<128x1xi1>
    %59 = vector.broadcast %58 : vector<128x1xi1> to vector<128x128xi1>
    %60 = vector.broadcast %cst_20 : f32 to vector<128x128xf32>
    %61 = arith.select %59, %48, %60 : vector<128x128xi1>, vector<128x128xf32>
    %c0_21 = arith.constant 0 : index
    %c0_22 = arith.constant 0 : index
    %62 = vector.load %arg8[%c0_21, %c0_22] : memref<1x128xf32, #tpu.memory_space<vmem>>, vector<1x128xf32>
    %cst_23 = arith.constant dense<0.000000e+00> : vector<128xf32>
    %63 = vector.multi_reduction <add>, %61, %cst_23 [0] : vector<128x128xf32> to vector<128xf32>
    %64 = vector.shape_cast %63 : vector<128xf32> to vector<1x128xf32>
    %65 = arith.addf %62, %64 : vector<1x128xf32>
    %c0_24 = arith.constant 0 : index
    %c0_25 = arith.constant 0 : index
    %66 = vector.load %arg8[%c0_24, %c0_25] : memref<1x128xf32, #tpu.memory_space<vmem>>, vector<1x128xf32>
    tpu.vector_store %arg8[%c0_24, %c0_25], %65 {strides = array<i32>} : memref<1x128xf32, #tpu.memory_space<vmem>>, vector<1x128xf32>,
    %c0_i32_26 = arith.constant 0 : i32
    %67 = arith.cmpi eq, %arg1, %c0_i32_26 : i32
    %68 = arith.extui %67 : i1 to i32
    %c0_i32_27 = arith.constant 0 : i32
    %69 = arith.cmpi ne, %68, %c0_i32_27 : i32
    scf.if %69 {
      %c0_28 = arith.constant 0 : index
      %c0_29 = arith.constant 0 : index
      %70 = vector.load %arg8[%c0_28, %c0_29] : memref<1x128xf32, #tpu.memory_space<vmem>>, vector<1x128xf32>
      %71 = vector.shape_cast %70 : vector<1x128xf32> to vector<1x1x128xf32>
      %72 = vector.shape_cast %71 : vector<1x1x128xf32> to vector<1x1x128xf32>
      %73 = vector.broadcast %72 : vector<1x1x128xf32> to vector<1x8x128xf32>
      %c0_30 = arith.constant 0 : index
      %c0_31 = arith.constant 0 : index
      %c0_32 = arith.constant 0 : index
      %74 = vector.load %arg7[%c0_30, %c0_31, %c0_32] : memref<1x8x128xf32, #tpu.memory_space<vmem>>, vector<1x8x128xf32>
      tpu.vector_store %arg7[%c0_30, %c0_31, %c0_32], %73 {strides = array<i32>} : memref<1x8x128xf32, #tpu.memory_space<vmem>>, vector<1x8x128xf32>,
    } else {
    }
    return
  }
  func.func @transform_0(%arg0: i32, %arg1: i32, %arg2: memref<1xi32, #tpu.memory_space<smem>>) -> (i32, i32) {
    %c1_i32 = arith.constant 1 : i32
    %0 = arith.muli %arg0, %c1_i32 : i32
    %1 = arith.addi %0, %arg1 : i32
    %c0_i32 = arith.constant 0 : i32
    %2 = arith.minsi %1, %c0_i32 : i32
    %c0_i32_0 = arith.constant 0 : i32
    %c0_i32_1 = arith.constant 0 : i32
    return %2, %c0_i32_0 : i32, i32
  }
  func.func @transform_1(%arg0: i32, %arg1: i32, %arg2: memref<1xi32, #tpu.memory_space<smem>>) -> (i32, i32) {
    %c1_i32 = arith.constant 1 : i32
    %0 = arith.muli %arg0, %c1_i32 : i32
    %1 = arith.addi %0, %arg1 : i32
    %c0_i32 = arith.constant 0 : i32
    %2 = arith.minsi %1, %c0_i32 : i32
    %c0_i32_0 = arith.constant 0 : i32
    %c0_i32_1 = arith.constant 0 : i32
    return %2, %c0_i32_0 : i32, i32
  }
  func.func @transform_2(%arg0: i32, %arg1: i32, %arg2: memref<1xi32, #tpu.memory_space<smem>>) -> (i32, i32) {
    %c0_i32 = arith.constant 0 : i32
    %c0_i32_0 = arith.constant 0 : i32
    %c0_i32_1 = arith.constant 0 : i32
    return %c0_i32, %c0_i32_0 : i32, i32
  }
  func.func @transform_3(%arg0: i32, %arg1: i32, %arg2: memref<1xi32, #tpu.memory_space<smem>>) -> (i32, i32) {
    %c0_i32 = arith.constant 0 : i32
    %c0_i32_0 = arith.constant 0 : i32
    %c0_i32_1 = arith.constant 0 : i32
    return %c0_i32, %c0_i32_0 : i32, i32
  }
  func.func @transform_4(%arg0: i32, %arg1: i32, %arg2: memref<1xi32, #tpu.memory_space<smem>>) -> (i32, i32, i32) {
    %c0_i32 = arith.constant 0 : i32
    %c0_i32_0 = arith.constant 0 : i32
    %c0_i32_1 = arith.constant 0 : i32
    return %arg0, %c0_i32, %c0_i32_0 : i32, i32, i32
  }
}

</mosaic_0001>

<llo_original>
// kernel: tpu_custom_call.1
$region0: #{tpu_custom_call.1}
  #allocation0 [shape = 'u32[]', space=smem, size = 0x4, offset = 0x4, fixed_abs, tag = 'smem constant byte address 0x4 - core index']
  #allocation1 [shape = 'u32[144,128]{1,0:T(1,128)}', space=vmem, size = 0x12000, scoped, tag = 'internal scratch']
  #allocation2 [shape = 'f32[1,128]{1,0:T(1,128)}', space=vmem, size = 0x200, scoped, tag = 'scratch operand']
  #allocation3 [shape = 's32[1]{0}', space=sflag, size = 0x4, scoped, tag = 'scoped memory for tpu_custom_call.1']
  #allocation4 [shape = 's32[1]{0:T(128)S(6)}', space=smem, size = 0x200, scoped, tag = 'prefetched SMEM operand 0']
  %s0 = inlined_call_operand.<no memory space> [shape: s32[1], index: 0, kind: input, shape index: {}]
  %s1 = inlined_call_operand.vmem [shape: f32[128,128], index: 1, kind: input, shape index: {}]
  %s2 = inlined_call_operand.vmem [shape: s32[128,32], index: 2, kind: input, shape index: {}]
  %s3 = inlined_call_operand.hbm [shape: bf16[256,128], index: 3, kind: input, shape index: {}]
  %s4 = inlined_call_operand.hbm [shape: f32[162,128], index: 4, kind: input, shape index: {}]
  %s5 = inlined_call_operand.hbm [shape: f32[1,8,128], index: 5, kind: output, shape index: {}]
  %s6 = sld [smem:[#allocation0]]
  $region42: #{tpu_custom_call.1} parent=0
    _
  %s8 = ssub.s32 1, %s6
  %s9 = scalar_select 0, %s8, %s6
  %10 = sst [smem:[#allocation4]] %s0
  $region1: #{tpu_custom_call.1} parent=0
    #allocation5 [shape = 'u8[65536]{0}', space=vmem, size = 0x10000, scoped, tag = 'input window, operand 3, single buffered']
    #allocation6 [shape = 's32[1]{0}', space=sflag, size = 0x4, scoped, tag = 'scoped memory for tpu_custom_call.1']
    #allocation7 [shape = 's32[1]{0}', space=sflag, size = 0x4, scoped, tag = 'scoped memory for tpu_custom_call.1']
    #allocation8 [shape = 'u8[86016]{0}', space=vmem, size = 0x15000, scoped, tag = 'input window, operand 4, single buffered']
    #allocation9 [shape = 's32[1]{0}', space=sflag, size = 0x4, scoped, tag = 'scoped memory for tpu_custom_call.1']
    #allocation10 [shape = 'u8[4096]{0}', space=vmem, size = 0x1000, scoped, tag = 'output window, operand 0, single buffered']
    %11 = vsyncpa [#allocation6], 0
    %12 = vsyncpa [#allocation9], 0
    %13 = vsyncpa [#allocation7], 0
    // Predicated region
    $region2: #{tpu_custom_call.1} parent=1 // pred_check
      _
    $region3: #{tpu_custom_call.1} parent=1 // pred_check_branch
      %15 = sbr.rel (0) target = $region5
    $region4: #{tpu_custom_call.1} parent=1 // pred_region
      %s16 = sadd.s32 0, 0
      %p17 = scmp.lt.s32.totalorder %s16, 0
      %s18 = scalar_select %p17, %s16, 0
      %s19 = smul.u32 16, %s18
      %p20 = scmp.lt.s32.totalorder %s19, 15
      %s21 = scalar_select %p20, %s19, 15
      %s22 = smul.addr %s21, 8
      %s23 = scalar_lea.vmem %s1, %s22
      %s24 = sadd.s32 0, 0
      %p25 = scmp.lt.s32.totalorder %s24, 0
      %s26 = scalar_select %p25, %s24, 0
      %s27 = smul.u32 16, %s26
    $region5: #{tpu_custom_call.1} parent=1 // pred_fallthru
      _
    // Predicated region
    $region6: #{tpu_custom_call.1} parent=1 // pred_check
      _
    $region7: #{tpu_custom_call.1} parent=1 // pred_check_branch
      %29 = sbr.rel (0) target = $region9
    $region8: #{tpu_custom_call.1} parent=1 // pred_region
      %s30 = sadd.s32 0, 0
      %p31 = scmp.lt.s32.totalorder %s30, 0
      %s32 = scalar_select %p31, %s30, 0
      %s33 = smul.u32 16, %s32
      %p34 = scmp.lt.s32.totalorder %s33, 15
      %s35 = scalar_select %p34, %s33, 15
      %s36 = smul.addr %s35, 8
      %s37 = scalar_lea.vmem %s2, %s36
      %s38 = sadd.s32 0, 0
      %p39 = scmp.lt.s32.totalorder %s38, 0
      %s40 = scalar_select %p39, %s38, 0
      %s41 = smul.u32 16, %s40
    $region9: #{tpu_custom_call.1} parent=1 // pred_fallthru
      _
    // Predicated region
    $region10: #{tpu_custom_call.1} parent=1 // pred_check
      _
    $region11: #{tpu_custom_call.1} parent=1 // pred_check_branch
      %43 = sbr.rel (0) target = $region13
    $region12: #{tpu_custom_call.1} parent=1 // pred_region
      %s45 = ssub.s32 2048, 2048
      %46 = vsyncadd [#allocation6], %s45
      %s47 = sshll.u32 [#allocation5], 4
      %s48 = int_to_ptr.vmem [resolvable:$true] %s47
      %53 = dma.hbm_to_vmem [thread:$0]  %s3, 2048, %s48, [#allocation6], 64, 64, 4
    $region13: #{tpu_custom_call.1} parent=1 // pred_fallthru
      _
    // Predicated region
    $region14: #{tpu_custom_call.1} parent=1 // pred_check
      _
    $region15: #{tpu_custom_call.1} parent=1 // pred_check_branch
      %55 = sbr.rel (0) target = $region17
    $region16: #{tpu_custom_call.1} parent=1 // pred_region
      %s57 = ssub.s32 2688, 2688
      %58 = vsyncadd [#allocation9], %s57
      %s59 = sshll.u32 [#allocation8], 4
      %s60 = int_to_ptr.vmem [resolvable:$true] %s59
      %65 = dma.hbm_to_vmem [thread:$0]  %s4, 2688, %s60, [#allocation9], 128, 128, 8
    $region17: #{tpu_custom_call.1} parent=1 // pred_fallthru
      _
    // Predicated region
    $region18: #{tpu_custom_call.1} parent=1 // pred_check
      _
    $region19: #{tpu_custom_call.1} parent=1 // pred_check_branch
      %67 = sbr.rel (0) target = $region21
    $region20: #{tpu_custom_call.1} parent=1 // pred_region
      %68 = dma.done [#allocation6], 2048
    $region21: #{tpu_custom_call.1} parent=1 // pred_fallthru
      _
    // Predicated region
    $region22: #{tpu_custom_call.1} parent=1 // pred_check
      _
    $region23: #{tpu_custom_call.1} parent=1 // pred_check_branch
      %70 = sbr.rel (0) target = $region25
    $region24: #{tpu_custom_call.1} parent=1 // pred_region
      %71 = dma.done [#allocation9], 2688
    $region25: #{tpu_custom_call.1} parent=1 // pred_fallthru
      _
    %s72 = sadd.s32 0, 0
    %p73 = scmp.lt.s32.totalorder %s72, 0
    %s74 = scalar_select %p73, %s72, 0
    %s75 = smul.u32 16, %s74
    %p76 = scmp.lt.s32.totalorder %s75, 15
    %s77 = scalar_select %p76, %s75, 15
    %s78 = smul.addr %s77, 8
    %s79 = scalar_lea.vmem %s1, %s78
    %s80 = sadd.s32 0, 0
    %p81 = scmp.lt.s32.totalorder %s80, 0
    %s82 = scalar_select %p81, %s80, 0
    %s83 = smul.u32 16, %s82
    %p84 = scmp.lt.s32.totalorder %s83, 15
    %s85 = scalar_select %p84, %s83, 15
    %s86 = smul.addr %s85, 8
    %s87 = scalar_lea.vmem %s2, %s86
    %s88 = sadd.s32 0, 0
    %p89 = scmp.lt.s32.totalorder %s88, 0
    %s90 = scalar_select %p89, %s88, 0
    %s91 = smul.u32 16, %s90
    %p92 = scmp.lt.s32.totalorder %s91, 15
    %s93 = scalar_select %p92, %s91, 15
    %s94 = smul.addr %s93, 8
    %s95 = scalar_lea.vmem %s1, %s94
    %s96 = sadd.s32 0, 0
    %p97 = scmp.lt.s32.totalorder %s96, 0
    %s98 = scalar_select %p97, %s96, 0
    %s99 = smul.u32 16, %s98
    %s100 = sadd.s32 0, 0
    %p101 = scmp.lt.s32.totalorder %s100, 0
    %s102 = scalar_select %p101, %s100, 0
    %s103 = smul.u32 16, %s102
    %p104 = scmp.lt.s32.totalorder %s103, 15
    %s105 = scalar_select %p104, %s103, 15
    %s106 = smul.addr %s105, 8
    %s107 = scalar_lea.vmem %s2, %s106
    %s108 = sadd.s32 0, 0
    %p109 = scmp.lt.s32.totalorder %s108, 0
    %s110 = scalar_select %p109, %s108, 0
    %s111 = smul.u32 16, %s110
    %p113 = scmp.eq.s32.totalorder 0, 0
    // Predicated region
    $region26: #{tpu_custom_call.1} parent=1 // pred_check
      %p114 = pneg %p113
    $region27: #{tpu_custom_call.1} parent=1 // pred_check_branch
      %116 = sbr.rel (%p114) target = $region29
    $region28: #{tpu_custom_call.1} parent=1 // pred_region
      %117 = vst [vmem:[#allocation2] sm:$0x1] 0.0
    $region29: #{tpu_custom_call.1} parent=1 // pred_fallthru
      _
    %v118 = vld [vmem:[%s95] sm:$0xff]
    %v119 = vld [vmem:[%s95 + $0x8] sm:$0xff]
    %v120 = vld [vmem:[%s95 + $0x10] sm:$0xff]
    %v121 = vld [vmem:[%s95 + $0x18] sm:$0xff]
    %v122 = vld [vmem:[%s95 + $0x20] sm:$0xff]
    %v123 = vld [vmem:[%s95 + $0x28] sm:$0xff]
    %v124 = vld [vmem:[%s95 + $0x30] sm:$0xff]
    %v125 = vld [vmem:[%s95 + $0x38] sm:$0xff]
    %v126 = vld [vmem:[%s95 + $0x40] sm:$0xff]
    %v127 = vld [vmem:[%s95 + $0x48] sm:$0xff]
    %v128 = vld [vmem:[%s95 + $0x50] sm:$0xff]
    %v129 = vld [vmem:[%s95 + $0x58] sm:$0xff]
    %v130 = vld [vmem:[%s95 + $0x60] sm:$0xff]
    %v131 = vld [vmem:[%s95 + $0x68] sm:$0xff]
    %v132 = vld [vmem:[%s95 + $0x70] sm:$0xff]
    %v133 = vld [vmem:[%s95 + $0x78] sm:$0xff]
    %v134 = vpack.c.bf16 %v119, %v118
    %v135 = vpack.c.bf16 %v121, %v120
    %v136 = vpack.c.bf16 %v123, %v122
    %v137 = vpack.c.bf16 %v125, %v124
    %v138 = vpack.c.bf16 %v127, %v126
    %v139 = vpack.c.bf16 %v129, %v128
    %v140 = vpack.c.bf16 %v131, %v130
    %v141 = vpack.c.bf16 %v133, %v132
    %v142 = vunpack.c.l.bf16 %v134
    %v143 = vunpack.c.h.bf16 %v134
    %v144 = vunpack.c.l.bf16 %v135
    %v145 = vunpack.c.h.bf16 %v135
    %v146 = vunpack.c.l.bf16 %v136
    %v147 = vunpack.c.h.bf16 %v136
    %v148 = vunpack.c.l.bf16 %v137
    %v149 = vunpack.c.h.bf16 %v137
    %v150 = vunpack.c.l.bf16 %v138
    %v151 = vunpack.c.h.bf16 %v138
    %v152 = vunpack.c.l.bf16 %v139
    %v153 = vunpack.c.h.bf16 %v139
    %v154 = vunpack.c.l.bf16 %v140
    %v155 = vunpack.c.h.bf16 %v140
    %v156 = vunpack.c.l.bf16 %v141
    %v157 = vunpack.c.h.bf16 %v141
    %v158 = vld [vmem:[#allocation5] sm:$0xf]
    %v159 = vld [vmem:[#allocation5 + $0x4] sm:$0xf]
    %v160 = vld [vmem:[#allocation5 + $0x8] sm:$0xf]
    %v161 = vld [vmem:[#allocation5 + $0xc] sm:$0xf]
    %v162 = vld [vmem:[#allocation5 + $0x10] sm:$0xf]
    %v163 = vld [vmem:[#allocation5 + $0x14] sm:$0xf]
    %v164 = vld [vmem:[#allocation5 + $0x18] sm:$0xf]
    %v165 = vld [vmem:[#allocation5 + $0x1c] sm:$0xf]
    %v166 = vld [vmem:[#allocation5 + $0x20] sm:$0xf]
    %v167 = vld [vmem:[#allocation5 + $0x24] sm:$0xf]
    %v168 = vld [vmem:[#allocation5 + $0x28] sm:$0xf]
    %v169 = vld [vmem:[#allocation5 + $0x2c] sm:$0xf]
    %v170 = vld [vmem:[#allocation5 + $0x30] sm:$0xf]
    %v171 = vld [vmem:[#allocation5 + $0x34] sm:$0xf]
    %v172 = vld [vmem:[#allocation5 + $0x38] sm:$0xf]
    %v173 = vld [vmem:[#allocation5 + $0x3c] sm:$0xf]
    %v190 = vunpack.c.l.b16 %v158
    %v191 = vunpack.c.l.b16 %v159
    %v192 = vunpack.c.l.b16 %v160
    %v193 = vunpack.c.l.b16 %v161
    %v194 = vunpack.c.l.b16 %v162
    %v195 = vunpack.c.l.b16 %v163
    %v196 = vunpack.c.l.b16 %v164
    %v197 = vunpack.c.l.b16 %v165
    %v198 = vunpack.c.l.b16 %v166
    %v199 = vunpack.c.l.b16 %v167
    %v200 = vunpack.c.l.b16 %v168
    %v201 = vunpack.c.l.b16 %v169
    %v202 = vunpack.c.l.b16 %v170
    %v203 = vunpack.c.l.b16 %v171
    %v204 = vunpack.c.l.b16 %v172
    %v205 = vunpack.c.l.b16 %v173
    %v206 = vpack.c.b16 %v191, %v190
    %v207 = vpack.c.b16 %v193, %v192
    %v208 = vpack.c.b16 %v195, %v194
    %v209 = vpack.c.b16 %v197, %v196
    %v210 = vpack.c.b16 %v199, %v198
    %v211 = vpack.c.b16 %v201, %v200
    %v212 = vpack.c.b16 %v203, %v202
    %v213 = vpack.c.b16 %v205, %v204
    %222 = vmatprep.subr.bf16.mxu0 0
    %223 = vmatpush1.bf16.msra.mxu0 %v213
    %224 = vmatprep.subr.bf16.mxu0 0
    %225 = vmatpush1.bf16.msra.mxu0 %v212
    %226 = vmatprep.subr.bf16.mxu0 0
    %227 = vmatpush1.bf16.msra.mxu0 %v211
    %228 = vmatprep.subr.bf16.mxu0 0
    %229 = vmatpush1.bf16.msra.mxu0 %v210
    %230 = vmatprep.subr.bf16.mxu0 0
    %231 = vmatpush1.bf16.msra.mxu0 %v209
    %232 = vmatprep.subr.bf16.mxu0 0
    %233 = vmatpush1.bf16.msra.mxu0 %v208
    %234 = vmatprep.subr.bf16.mxu0 0
    %235 = vmatpush1.bf16.msra.mxu0 %v207
    %236 = vmatprep.subr.bf16.mxu0 0
    %237 = vmatpush1.bf16.msra.mxu0 %v206
    %238 = vmatprep.subr.bf16.mxu0 0
    %239 = vmatpush2.bf16.msra.mxu0 0
    %240 = vmatprep.subr.bf16.mxu0 0
    %241 = vmatpush2.bf16.msra.mxu0 0
    %242 = vmatprep.subr.bf16.mxu0 0
    %243 = vmatpush2.bf16.msra.mxu0 0
    %244 = vmatprep.subr.bf16.mxu0 0
    %245 = vmatpush2.bf16.msra.mxu0 0
    %246 = vmatprep.subr.bf16.mxu0 0
    %247 = vmatpush2.bf16.msra.mxu0 0
    %248 = vmatprep.subr.bf16.mxu0 0
    %249 = vmatpush2.bf16.msra.mxu0 0
    %250 = vmatprep.subr.bf16.mxu0 0
    %251 = vmatpush2.bf16.msra.mxu0 0
    %252 = vmatprep.subr.bf16.mxu0 0
    %253 = vmatpush2.bf16.msra.mxu0 0
    %254 = vmatprep.mubr.bf16.mxu0 0
    %255 = vmatmul.mubr.bf16.gmra.mxu0 %v134
    %v256 = vpop.f32.mrf.mxu0
    %v257 = vadd.f32 0.0, %v256
    %v258 = vpop.f32.mrf.mxu0
    %v259 = vpop.f32.mrf.mxu0
    %v260 = vadd.f32 0.0, %v259
    %v261 = vpop.f32.mrf.mxu0
    %262 = vmatprep.mubr.bf16.mxu0 0
    %263 = vmatmul.mubr.bf16.gmra.mxu0 %v135
    %v264 = vpop.f32.mrf.mxu0
    %v265 = vadd.f32 0.0, %v264
    %v266 = vpop.f32.mrf.mxu0
    %v267 = vpop.f32.mrf.mxu0
    %v268 = vadd.f32 0.0, %v267
    %v269 = vpop.f32.mrf.mxu0
    %270 = vmatprep.mubr.bf16.mxu0 0
    %271 = vmatmul.mubr.bf16.gmra.mxu0 %v136
    %v272 = vpop.f32.mrf.mxu0
    %v273 = vadd.f32 0.0, %v272
    %v274 = vpop.f32.mrf.mxu0
    %v275 = vpop.f32.mrf.mxu0
    %v276 = vadd.f32 0.0, %v275
    %v277 = vpop.f32.mrf.mxu0
    %278 = vmatprep.mubr.bf16.mxu0 0
    %279 = vmatmul.mubr.bf16.gmra.mxu0 %v137
    %v280 = vpop.f32.mrf.mxu0
    %v281 = vadd.f32 0.0, %v280
    %v282 = vpop.f32.mrf.mxu0
    %v283 = vpop.f32.mrf.mxu0
    %v284 = vadd.f32 0.0, %v283
    %v285 = vpop.f32.mrf.mxu0
    %286 = vmatprep.mubr.bf16.mxu0 0
    %287 = vmatmul.mubr.bf16.gmra.mxu0 %v138
    %v288 = vpop.f32.mrf.mxu0
    %v289 = vadd.f32 0.0, %v288
    %v290 = vpop.f32.mrf.mxu0
    %v291 = vpop.f32.mrf.mxu0
    %v292 = vadd.f32 0.0, %v291
    %v293 = vpop.f32.mrf.mxu0
    %294 = vmatprep.mubr.bf16.mxu0 0
    %295 = vmatmul.mubr.bf16.gmra.mxu0 %v139
    %v296 = vpop.f32.mrf.mxu0
    %v297 = vadd.f32 0.0, %v296
    %v298 = vpop.f32.mrf.mxu0
    %v299 = vpop.f32.mrf.mxu0
    %v300 = vadd.f32 0.0, %v299
    %v301 = vpop.f32.mrf.mxu0
    %302 = vmatprep.mubr.bf16.mxu0 0
    %303 = vmatmul.mubr.bf16.gmra.mxu0 %v140
    %v304 = vpop.f32.mrf.mxu0
    %v305 = vadd.f32 0.0, %v304
    %v306 = vpop.f32.mrf.mxu0
    %v307 = vpop.f32.mrf.mxu0
    %v308 = vadd.f32 0.0, %v307
    %v309 = vpop.f32.mrf.mxu0
    %310 = vmatprep.mubr.bf16.mxu0 0
    %311 = vmatmul.mubr.bf16.gmra.mxu0 %v141
    %v312 = vpop.f32.mrf.mxu0
    %v313 = vadd.f32 0.0, %v312
    %v314 = vpop.f32.mrf.mxu0
    %v315 = vpop.f32.mrf.mxu0
    %v316 = vadd.f32 0.0, %v315
    %v317 = vpop.f32.mrf.mxu0
    %318 = vdwg.mxu0
    %v319 = vmax.f32 %v142, %v257
    %v320 = vmax.f32 %v143, %v260
    %v321 = vmax.f32 %v144, %v265
    %v322 = vmax.f32 %v145, %v268
    %v323 = vmax.f32 %v146, %v273
    %v324 = vmax.f32 %v147, %v276
    %v325 = vmax.f32 %v148, %v281
    %v326 = vmax.f32 %v149, %v284
    %v327 = vmax.f32 %v150, %v289
    %v328 = vmax.f32 %v151, %v292
    %v329 = vmax.f32 %v152, %v297
    %v330 = vmax.f32 %v153, %v300
    %v331 = vmax.f32 %v154, %v305
    %v332 = vmax.f32 %v155, %v308
    %v333 = vmax.f32 %v156, %v313
    %v334 = vmax.f32 %v157, %v316
    %v335 = vld [vmem:[#allocation5 + $0x40] sm:$0xf]
    %v336 = vld [vmem:[#allocation5 + $0x44] sm:$0xf]
    %v337 = vld [vmem:[#allocation5 + $0x48] sm:$0xf]
    %v338 = vld [vmem:[#allocation5 + $0x4c] sm:$0xf]
    %v339 = vld [vmem:[#allocation5 + $0x50] sm:$0xf]
    %v340 = vld [vmem:[#allocation5 + $0x54] sm:$0xf]
    %v341 = vld [vmem:[#allocation5 + $0x58] sm:$0xf]
    %v342 = vld [vmem:[#allocation5 + $0x5c] sm:$0xf]
    %v343 = vld [vmem:[#allocation5 + $0x60] sm:$0xf]
    %v344 = vld [vmem:[#allocation5 + $0x64] sm:$0xf]
    %v345 = vld [vmem:[#allocation5 + $0x68] sm:$0xf]
    %v346 = vld [vmem:[#allocation5 + $0x6c] sm:$0xf]
    %v347 = vld [vmem:[#allocation5 + $0x70] sm:$0xf]
    %v348 = vld [vmem:[#allocation5 + $0x74] sm:$0xf]
    %v349 = vld [vmem:[#allocation5 + $0x78] sm:$0xf]
    %v350 = vld [vmem:[#allocation5 + $0x7c] sm:$0xf]
    %v351 = vpack.c.bf16 %v320, %v319
    %v352 = vpack.c.bf16 %v322, %v321
    %v353 = vpack.c.bf16 %v324, %v323
    %v354 = vpack.c.bf16 %v326, %v325
    %v355 = vpack.c.bf16 %v328, %v327
    %v356 = vpack.c.bf16 %v330, %v329
    %v357 = vpack.c.bf16 %v332, %v331
    %v358 = vpack.c.bf16 %v334, %v333
    %v375 = vunpack.c.l.b16 %v335
    %v376 = vunpack.c.l.b16 %v336
    %v377 = vunpack.c.l.b16 %v337
    %v378 = vunpack.c.l.b16 %v338
    %v379 = vunpack.c.l.b16 %v339
    %v380 = vunpack.c.l.b16 %v340
    %v381 = vunpack.c.l.b16 %v341
    %v382 = vunpack.c.l.b16 %v342
    %v383 = vunpack.c.l.b16 %v343
    %v384 = vunpack.c.l.b16 %v344
    %v385 = vunpack.c.l.b16 %v345
    %v386 = vunpack.c.l.b16 %v346
    %v387 = vunpack.c.l.b16 %v347
    %v388 = vunpack.c.l.b16 %v348
    %v389 = vunpack.c.l.b16 %v349
    %v390 = vunpack.c.l.b16 %v350
    %v391 = vpack.c.b16 %v376, %v375
    %v392 = vpack.c.b16 %v378, %v377
    %v393 = vpack.c.b16 %v380, %v379
    %v394 = vpack.c.b16 %v382, %v381
    %v395 = vpack.c.b16 %v384, %v383
    %v396 = vpack.c.b16 %v386, %v385
    %v397 = vpack.c.b16 %v388, %v387
    %v398 = vpack.c.b16 %v390, %v389
    %407 = vmatprep.subr.bf16.mxu0 0
    %408 = vmatpush1.bf16.msra.mxu0 %v398
    %409 = vmatprep.subr.bf16.mxu0 0
    %410 = vmatpush1.bf16.msra.mxu0 %v397
    %411 = vmatprep.subr.bf16.mxu0 0
    %412 = vmatpush1.bf16.msra.mxu0 %v396
    %413 = vmatprep.subr.bf16.mxu0 0
    %414 = vmatpush1.bf16.msra.mxu0 %v395
    %415 = vmatprep.subr.bf16.mxu0 0
    %416 = vmatpush1.bf16.msra.mxu0 %v394
    %417 = vmatprep.subr.bf16.mxu0 0
    %418 = vmatpush1.bf16.msra.mxu0 %v393
    %419 = vmatprep.subr.bf16.mxu0 0
    %420 = vmatpush1.bf16.msra.mxu0 %v392
    %421 = vmatprep.subr.bf16.mxu0 0
    %422 = vmatpush1.bf16.msra.mxu0 %v391
    %423 = vmatprep.subr.bf16.mxu0 0
    %424 = vmatpush2.bf16.msra.mxu0 0
    %425 = vmatprep.subr.bf16.mxu0 0
    %426 = vmatpush2.bf16.msra.mxu0 0
    %427 = vmatprep.subr.bf16.mxu0 0
    %428 = vmatpush2.bf16.msra.mxu0 0
    %429 = vmatprep.subr.bf16.mxu0 0
    %430 = vmatpush2.bf16.msra.mxu0 0
    %431 = vmatprep.subr.bf16.mxu0 0
    %432 = vmatpush2.bf16.msra.mxu0 0
    %433 = vmatprep.subr.bf16.mxu0 0
    %434 = vmatpush2.bf16.msra.mxu0 0
    %435 = vmatprep.subr.bf16.mxu0 0
    %436 = vmatpush2.bf16.msra.mxu0 0
    %437 = vmatprep.subr.bf16.mxu0 0
    %438 = vmatpush2.bf16.msra.mxu0 0
    %439 = vmatprep.mubr.bf16.mxu0 0
    %440 = vmatmul.mubr.bf16.gmra.mxu0 %v351
    %v441 = vpop.f32.mrf.mxu0
    %v442 = vadd.f32 0.0, %v441
    %v443 = vpop.f32.mrf.mxu0
    %v444 = vpop.f32.mrf.mxu0
    %v445 = vadd.f32 0.0, %v444
    %v446 = vpop.f32.mrf.mxu0
    %447 = vmatprep.mubr.bf16.mxu0 0
    %448 = vmatmul.mubr.bf16.gmra.mxu0 %v352
    %v449 = vpop.f32.mrf.mxu0
    %v450 = vadd.f32 0.0, %v449
    %v451 = vpop.f32.mrf.mxu0
    %v452 = vpop.f32.mrf.mxu0
    %v453 = vadd.f32 0.0, %v452
    %v454 = vpop.f32.mrf.mxu0
    %455 = vmatprep.mubr.bf16.mxu0 0
    %456 = vmatmul.mubr.bf16.gmra.mxu0 %v353
    %v457 = vpop.f32.mrf.mxu0
    %v458 = vadd.f32 0.0, %v457
    %v459 = vpop.f32.mrf.mxu0
    %v460 = vpop.f32.mrf.mxu0
    %v461 = vadd.f32 0.0, %v460
    %v462 = vpop.f32.mrf.mxu0
    %463 = vmatprep.mubr.bf16.mxu0 0
    %464 = vmatmul.mubr.bf16.gmra.mxu0 %v354
    %v465 = vpop.f32.mrf.mxu0
    %v466 = vadd.f32 0.0, %v465
    %v467 = vpop.f32.mrf.mxu0
    %v468 = vpop.f32.mrf.mxu0
    %v469 = vadd.f32 0.0, %v468
    %v470 = vpop.f32.mrf.mxu0
    %471 = vmatprep.mubr.bf16.mxu0 0
    %472 = vmatmul.mubr.bf16.gmra.mxu0 %v355
    %v473 = vpop.f32.mrf.mxu0
    %v474 = vadd.f32 0.0, %v473
    %v475 = vpop.f32.mrf.mxu0
    %v476 = vpop.f32.mrf.mxu0
    %v477 = vadd.f32 0.0, %v476
    %v478 = vpop.f32.mrf.mxu0
    %479 = vmatprep.mubr.bf16.mxu0 0
    %480 = vmatmul.mubr.bf16.gmra.mxu0 %v356
    %v481 = vpop.f32.mrf.mxu0
    %v482 = vadd.f32 0.0, %v481
    %v483 = vpop.f32.mrf.mxu0
    %v484 = vpop.f32.mrf.mxu0
    %v485 = vadd.f32 0.0, %v484
    %v486 = vpop.f32.mrf.mxu0
    %487 = vmatprep.mubr.bf16.mxu0 0
    %488 = vmatmul.mubr.bf16.gmra.mxu0 %v357
    %v489 = vpop.f32.mrf.mxu0
    %v490 = vadd.f32 0.0, %v489
    %v491 = vpop.f32.mrf.mxu0
    %v492 = vpop.f32.mrf.mxu0
    %v493 = vadd.f32 0.0, %v492
    %v494 = vpop.f32.mrf.mxu0
    %495 = vmatprep.mubr.bf16.mxu0 0
    %496 = vmatmul.mubr.bf16.gmra.mxu0 %v358
    %v497 = vpop.f32.mrf.mxu0
    %v498 = vadd.f32 0.0, %v497
    %v499 = vpop.f32.mrf.mxu0
    %v500 = vpop.f32.mrf.mxu0
    %v501 = vadd.f32 0.0, %v500
    %v502 = vpop.f32.mrf.mxu0
    %503 = vdwg.mxu0
    %v504 = vmax.f32 %v319, %v442
    %v505 = vmax.f32 %v320, %v445
    %v506 = vmax.f32 %v321, %v450
    %v507 = vmax.f32 %v322, %v453
    %v508 = vmax.f32 %v323, %v458
    %v509 = vmax.f32 %v324, %v461
    %v510 = vmax.f32 %v325, %v466
    %v511 = vmax.f32 %v326, %v469
    %v512 = vmax.f32 %v327, %v474
    %v513 = vmax.f32 %v328, %v477
    %v514 = vmax.f32 %v329, %v482
    %v515 = vmax.f32 %v330, %v485
    %v516 = vmax.f32 %v331, %v490
    %v517 = vmax.f32 %v332, %v493
    %v518 = vmax.f32 %v333, %v498
    %v519 = vmax.f32 %v334, %v501
    %v520 = vld [vmem:[#allocation8] sm:$0xff]
    %v521 = vld [vmem:[#allocation8 + $0x8] sm:$0xff]
    %v522 = vld [vmem:[#allocation8 + $0x10] sm:$0xff]
    %v523 = vld [vmem:[#allocation8 + $0x18] sm:$0xff]
    %v524 = vld [vmem:[#allocation8 + $0x20] sm:$0xff]
    %v525 = vld [vmem:[#allocation8 + $0x28] sm:$0xff]
    %v526 = vld [vmem:[#allocation8 + $0x30] sm:$0xff]
    %v527 = vld [vmem:[#allocation8 + $0x38] sm:$0xff]
    %v528 = vld [vmem:[#allocation8 + $0x40] sm:$0xff]
    %v529 = vld [vmem:[#allocation8 + $0x48] sm:$0xff]
    %v530 = vld [vmem:[#allocation8 + $0x50] sm:$0xff]
    %v531 = vld [vmem:[#allocation8 + $0x58] sm:$0xff]
    %v532 = vld [vmem:[#allocation8 + $0x60] sm:$0xff]
    %v533 = vld [vmem:[#allocation8 + $0x68] sm:$0xff]
    %v534 = vld [vmem:[#allocation8 + $0x70] sm:$0xff]
    %v535 = vld [vmem:[#allocation8 + $0x78] sm:$0xff]
    %v536 = vld [vmem:[#allocation8 + $0x80] sm:$0xff]
    %v537 = vld [vmem:[#allocation8 + $0x88] sm:$0xff]
    %v538 = vld [vmem:[#allocation8 + $0x90] sm:$0xff]
    %v539 = vld [vmem:[#allocation8 + $0x98] sm:$0xff]
    %v540 = vld [vmem:[#allocation8 + $0xa0] sm:$0x3]
    %v541 = vlaneseq
    %v542 = vshrl.u32 %v541, 7
    %v543 = vsub.s32 0, %v542
    %v544 = vrot.slane %v540, %v543
    %v545 = vlaneseq
    %v546 = vshrl.u32 %v545, 7
    %v547 = vsub.s32 1, %v546
    %v548 = vrot.slane %v540, %v547
    %v549 = vsub.f32 %v118, %v504
    %v550 = vsub.f32 %v119, %v505
    %v551 = vsub.f32 %v120, %v506
    %v552 = vsub.f32 %v121, %v507
    %v553 = vsub.f32 %v122, %v508
    %v554 = vsub.f32 %v123, %v509
    %v555 = vsub.f32 %v124, %v510
    %v556 = vsub.f32 %v125, %v511
    %v557 = vsub.f32 %v126, %v512
    %v558 = vsub.f32 %v127, %v513
    %v559 = vsub.f32 %v128, %v514
    %v560 = vsub.f32 %v129, %v515
    %v561 = vsub.f32 %v130, %v516
    %v562 = vsub.f32 %v131, %v517
    %v563 = vsub.f32 %v132, %v518
    %v564 = vsub.f32 %v133, %v519
    %v565 = vmul.f32 %v549, 1.442695
    %v566 = vpow.pop %v565
    %v567 = vmul.f32 %v550, 1.442695
    %v568 = vpow.pop %v567
    %v569 = vmul.f32 %v551, 1.442695
    %v570 = vpow.pop %v569
    %v571 = vmul.f32 %v552, 1.442695
    %v572 = vpow.pop %v571
    %v573 = vmul.f32 %v553, 1.442695
    %v574 = vpow.pop %v573
    %v575 = vmul.f32 %v554, 1.442695
    %v576 = vpow.pop %v575
    %v577 = vmul.f32 %v555, 1.442695
    %v578 = vpow.pop %v577
    %v579 = vmul.f32 %v556, 1.442695
    %v580 = vpow.pop %v579
    %v581 = vmul.f32 %v557, 1.442695
    %v582 = vpow.pop %v581
    %v583 = vmul.f32 %v558, 1.442695
    %v584 = vpow.pop %v583
    %v585 = vmul.f32 %v559, 1.442695
    %v586 = vpow.pop %v585
    %v587 = vmul.f32 %v560, 1.442695
    %v588 = vpow.pop %v587
    %v589 = vmul.f32 %v561, 1.442695
    %v590 = vpow.pop %v589
    %v591 = vmul.f32 %v562, 1.442695
    %v592 = vpow.pop %v591
    %v593 = vmul.f32 %v563, 1.442695
    %v594 = vpow.pop %v593
    %v595 = vmul.f32 %v564, 1.442695
    %v596 = vpow.pop %v595
    %597 = vmatprep.subr.mxu0 0.0
    %598 = vmatpush1.msra.mxu0 %v535
    %599 = vmatprep.subr.mxu0 0.0
    %600 = vmatpush1.msra.mxu0 %v534
    %601 = vmatprep.subr.mxu0 0.0
    %602 = vmatpush1.msra.mxu0 %v533
    %603 = vmatprep.subr.mxu0 0.0
    %604 = vmatpush1.msra.mxu0 %v532
    %605 = vmatprep.subr.mxu0 0.0
    %606 = vmatpush1.msra.mxu0 %v531
    %607 = vmatprep.subr.mxu0 0.0
    %608 = vmatpush1.msra.mxu0 %v530
    %609 = vmatprep.subr.mxu0 0.0
    %610 = vmatpush1.msra.mxu0 %v529
    %611 = vmatprep.subr.mxu0 0.0
    %612 = vmatpush1.msra.mxu0 %v528
    %613 = vmatprep.subr.mxu0 0.0
    %614 = vmatpush1.msra.mxu0 %v527
    %615 = vmatprep.subr.mxu0 0.0
    %616 = vmatpush1.msra.mxu0 %v526
    %617 = vmatprep.subr.mxu0 0.0
    %618 = vmatpush1.msra.mxu0 %v525
    %619 = vmatprep.subr.mxu0 0.0
    %620 = vmatpush1.msra.mxu0 %v524
    %621 = vmatprep.subr.mxu0 0.0
    %622 = vmatpush1.msra.mxu0 %v523
    %623 = vmatprep.subr.mxu0 0.0
    %624 = vmatpush1.msra.mxu0 %v522
    %625 = vmatprep.subr.mxu0 0.0
    %626 = vmatpush1.msra.mxu0 %v521
    %627 = vmatprep.subr.mxu0 0.0
    %628 = vmatpush1.msra.mxu0 %v520
    %629 = vmatprep.subr.mxu0 0.0
    %630 = vmatpush2.msra.mxu0 0.0
    %631 = vmatprep.subr.mxu0 0.0
    %632 = vmatpush2.msra.mxu0 0.0
    %633 = vmatprep.subr.mxu0 0.0
    %634 = vmatpush2.msra.mxu0 0.0
    %635 = vmatprep.subr.mxu0 0.0
    %636 = vmatpush2.msra.mxu0 0.0
    %637 = vmatprep.subr.mxu0 0.0
    %638 = vmatpush2.msra.mxu0 0.0
    %639 = vmatprep.subr.mxu0 0.0
    %640 = vmatpush2.msra.mxu0 0.0
    %641 = vmatprep.subr.mxu0 0.0
    %642 = vmatpush2.msra.mxu0 0.0
    %643 = vmatprep.subr.mxu0 0.0
    %644 = vmatpush2.msra.mxu0 0.0
    %645 = vmatprep.subr.mxu0 0.0
    %646 = vmatpush2.msra.mxu0 0.0
    %647 = vmatprep.subr.mxu0 0.0
    %648 = vmatpush2.msra.mxu0 0.0
    %649 = vmatprep.subr.mxu0 0.0
    %650 = vmatpush2.msra.mxu0 0.0
    %651 = vmatprep.subr.mxu0 0.0
    %652 = vmatpush2.msra.mxu0 0.0
    %653 = vmatprep.subr.mxu0 0.0
    %654 = vmatpush2.msra.mxu0 0.0
    %655 = vmatprep.subr.mxu0 0.0
    %656 = vmatpush2.msra.mxu0 0.0
    %657 = vmatprep.subr.mxu0 0.0
    %658 = vmatpush2.msra.mxu0 0.0
    %659 = vmatprep.subr.mxu0 0.0
    %660 = vmatpush2.msra.mxu0 0.0
    %661 = vmatprep.mubr.f32.mxu0 0.0
    %662 = vmatmul.mubr.f32.gmra.mxu0 %v566
    %v663 = vpop.f32.mrf.mxu0
    %v664 = vadd.f32 0.0, %v663
    %v665 = vpop.f32.mrf.mxu0
    %666 = vmatprep.mubr.f32.mxu0 0.0
    %667 = vmatmul.mubr.f32.gmra.mxu0 %v568
    %v668 = vpop.f32.mrf.mxu0
    %v669 = vadd.f32 0.0, %v668
    %v670 = vpop.f32.mrf.mxu0
    %671 = vmatprep.mubr.f32.mxu0 0.0
    %672 = vmatmul.mubr.f32.gmra.mxu0 %v570
    %v673 = vpop.f32.mrf.mxu0
    %v674 = vadd.f32 0.0, %v673
    %v675 = vpop.f32.mrf.mxu0
    %676 = vmatprep.mubr.f32.mxu0 0.0
    %677 = vmatmul.mubr.f32.gmra.mxu0 %v572
    %v678 = vpop.f32.mrf.mxu0
    %v679 = vadd.f32 0.0, %v678
    %v680 = vpop.f32.mrf.mxu0
    %681 = vmatprep.mubr.f32.mxu0 0.0
    %682 = vmatmul.mubr.f32.gmra.mxu0 %v574
    %v683 = vpop.f32.mrf.mxu0
    %v684 = vadd.f32 0.0, %v683
    %v685 = vpop.f32.mrf.mxu0
    %686 = vmatprep.mubr.f32.mxu0 0.0
    %687 = vmatmul.mubr.f32.gmra.mxu0 %v576
    %v688 = vpop.f32.mrf.mxu0
    %v689 = vadd.f32 0.0, %v688
    %v690 = vpop.f32.mrf.mxu0
    %691 = vmatprep.mubr.f32.mxu0 0.0
    %692 = vmatmul.mubr.f32.gmra.mxu0 %v578
    %v693 = vpop.f32.mrf.mxu0
    %v694 = vadd.f32 0.0, %v693
    %v695 = vpop.f32.mrf.mxu0
    %696 = vmatprep.mubr.f32.mxu0 0.0
    %697 = vmatmul.mubr.f32.gmra.mxu0 %v580
    %v698 = vpop.f32.mrf.mxu0
    %v699 = vadd.f32 0.0, %v698
    %v700 = vpop.f32.mrf.mxu0
    %701 = vmatprep.mubr.f32.mxu0 0.0
    %702 = vmatmul.mubr.f32.gmra.mxu0 %v582
    %v703 = vpop.f32.mrf.mxu0
    %v704 = vadd.f32 0.0, %v703
    %v705 = vpop.f32.mrf.mxu0
    %706 = vmatprep.mubr.f32.mxu0 0.0
    %707 = vmatmul.mubr.f32.gmra.mxu0 %v584
    %v708 = vpop.f32.mrf.mxu0
    %v709 = vadd.f32 0.0, %v708
    %v710 = vpop.f32.mrf.mxu0
    %711 = vmatprep.mubr.f32.mxu0 0.0
    %712 = vmatmul.mubr.f32.gmra.mxu0 %v586
    %v713 = vpop.f32.mrf.mxu0
    %v714 = vadd.f32 0.0, %v713
    %v715 = vpop.f32.mrf.mxu0
    %716 = vmatprep.mubr.f32.mxu0 0.0
    %717 = vmatmul.mubr.f32.gmra.mxu0 %v588
    %v718 = vpop.f32.mrf.mxu0
    %v719 = vadd.f32 0.0, %v718
    %v720 = vpop.f32.mrf.mxu0
    %721 = vmatprep.mubr.f32.mxu0 0.0
    %722 = vmatmul.mubr.f32.gmra.mxu0 %v590
    %v723 = vpop.f32.mrf.mxu0
    %v724 = vadd.f32 0.0, %v723
    %v725 = vpop.f32.mrf.mxu0
    %726 = vmatprep.mubr.f32.mxu0 0.0
    %727 = vmatmul.mubr.f32.gmra.mxu0 %v592
    %v728 = vpop.f32.mrf.mxu0
    %v729 = vadd.f32 0.0, %v728
    %v730 = vpop.f32.mrf.mxu0
    %731 = vmatprep.mubr.f32.mxu0 0.0
    %732 = vmatmul.mubr.f32.gmra.mxu0 %v594
    %v733 = vpop.f32.mrf.mxu0
    %v734 = vadd.f32 0.0, %v733
    %v735 = vpop.f32.mrf.mxu0
    %736 = vmatprep.mubr.f32.mxu0 0.0
    %737 = vmatmul.mubr.f32.gmra.mxu0 %v596
    %v738 = vpop.f32.mrf.mxu0
    %v739 = vadd.f32 0.0, %v738
    %v740 = vpop.f32.mrf.mxu0
    %741 = vdwg.mxu0
    %v742 = vlog2.pop %v664
    %v743 = vmul.f32 %v742, 0.6931472
    %v744 = vlog2.pop %v669
    %v745 = vmul.f32 %v744, 0.6931472
    %v746 = vlog2.pop %v674
    %v747 = vmul.f32 %v746, 0.6931472
    %v748 = vlog2.pop %v679
    %v749 = vmul.f32 %v748, 0.6931472
    %v750 = vlog2.pop %v684
    %v751 = vmul.f32 %v750, 0.6931472
    %v752 = vlog2.pop %v689
    %v753 = vmul.f32 %v752, 0.6931472
    %v754 = vlog2.pop %v694
    %v755 = vmul.f32 %v754, 0.6931472
    %v756 = vlog2.pop %v699
    %v757 = vmul.f32 %v756, 0.6931472
    %v758 = vlog2.pop %v704
    %v759 = vmul.f32 %v758, 0.6931472
    %v760 = vlog2.pop %v709
    %v761 = vmul.f32 %v760, 0.6931472
    %v762 = vlog2.pop %v714
    %v763 = vmul.f32 %v762, 0.6931472
    %v764 = vlog2.pop %v719
    %v765 = vmul.f32 %v764, 0.6931472
    %v766 = vlog2.pop %v724
    %v767 = vmul.f32 %v766, 0.6931472
    %v768 = vlog2.pop %v729
    %v769 = vmul.f32 %v768, 0.6931472
    %v770 = vlog2.pop %v734
    %v771 = vmul.f32 %v770, 0.6931472
    %v772 = vlog2.pop %v739
    %v773 = vmul.f32 %v772, 0.6931472
    %v774 = vadd.f32 %v504, %v743
    %v775 = vadd.f32 %v505, %v745
    %v776 = vadd.f32 %v506, %v747
    %v777 = vadd.f32 %v507, %v749
    %v778 = vadd.f32 %v508, %v751
    %v779 = vadd.f32 %v509, %v753
    %v780 = vadd.f32 %v510, %v755
    %v781 = vadd.f32 %v511, %v757
    %v782 = vadd.f32 %v512, %v759
    %v783 = vadd.f32 %v513, %v761
    %v784 = vadd.f32 %v514, %v763
    %v785 = vadd.f32 %v515, %v765
    %v786 = vadd.f32 %v516, %v767
    %v787 = vadd.f32 %v517, %v769
    %v788 = vadd.f32 %v518, %v771
    %v789 = vadd.f32 %v519, %v773
    %v790 = vld [vmem:[%s107] sm:$0xff]
    %v791 = vld [vmem:[%s107 + $0x8] sm:$0xff]
    %v792 = vld [vmem:[%s107 + $0x10] sm:$0xff]
    %v793 = vld [vmem:[%s107 + $0x18] sm:$0xff]
    %v794 = vld [vmem:[%s107 + $0x20] sm:$0xff]
    %v795 = vld [vmem:[%s107 + $0x28] sm:$0xff]
    %v796 = vld [vmem:[%s107 + $0x30] sm:$0xff]
    %v797 = vld [vmem:[%s107 + $0x38] sm:$0xff]
    %v798 = vld [vmem:[%s107 + $0x40] sm:$0xff]
    %v799 = vld [vmem:[%s107 + $0x48] sm:$0xff]
    %v800 = vld [vmem:[%s107 + $0x50] sm:$0xff]
    %v801 = vld [vmem:[%s107 + $0x58] sm:$0xff]
    %v802 = vld [vmem:[%s107 + $0x60] sm:$0xff]
    %v803 = vld [vmem:[%s107 + $0x68] sm:$0xff]
    %v804 = vld [vmem:[%s107 + $0x70] sm:$0xff]
    %v805 = vld [vmem:[%s107 + $0x78] sm:$0xff]
    %v806 = vcvt.s32.f32 %v790
    %v807 = vcvt.s32.f32 %v791
    %v808 = vcvt.s32.f32 %v792
    %v809 = vcvt.s32.f32 %v793
    %v810 = vcvt.s32.f32 %v794
    %v811 = vcvt.s32.f32 %v795
    %v812 = vcvt.s32.f32 %v796
    %v813 = vcvt.s32.f32 %v797
    %v814 = vcvt.s32.f32 %v798
    %v815 = vcvt.s32.f32 %v799
    %v816 = vcvt.s32.f32 %v800
    %v817 = vcvt.s32.f32 %v801
    %v818 = vcvt.s32.f32 %v802
    %v819 = vcvt.s32.f32 %v803
    %v820 = vcvt.s32.f32 %v804
    %v821 = vcvt.s32.f32 %v805
    %vm822 = vcmask 261120
    %v824 = vsel %vm822, %v806, 0
    %v827 = vsel %vm822, %v807, 0
    %v830 = vsel %vm822, %v808, 0
    %v833 = vsel %vm822, %v809, 0
    %v836 = vsel %vm822, %v810, 0
    %v839 = vsel %vm822, %v811, 0
    %v842 = vsel %vm822, %v812, 0
    %v845 = vsel %vm822, %v813, 0
    %v848 = vsel %vm822, %v814, 0
    %v851 = vsel %vm822, %v815, 0
    %v854 = vsel %vm822, %v816, 0
    %v857 = vsel %vm822, %v817, 0
    %v860 = vsel %vm822, %v818, 0
    %v863 = vsel %vm822, %v819, 0
    %v866 = vsel %vm822, %v820, 0
    %v869 = vsel %vm822, %v821, 0
    %871 = vmatprep.subr.mxu0 0.0
    %872 = vmatpush1.msra.mxu0 0.0
    %873 = vmatprep.subr.mxu0 0.0
    %874 = vmatpush1.msra.mxu0 0.0
    %875 = vmatprep.subr.mxu0 0.0
    %876 = vmatpush1.msra.mxu0 0.0
    %877 = vmatprep.subr.mxu0 0.0
    %878 = vmatpush1.msra.mxu0 0.0
    %879 = vmatprep.subr.mxu0 0.0
    %880 = vmatpush1.msra.mxu0 0.0
    %881 = vmatprep.subr.mxu0 0.0
    %882 = vmatpush1.msra.mxu0 0.0
    %883 = vmatprep.subr.mxu0 0.0
    %884 = vmatpush1.msra.mxu0 0.0
    %885 = vmatprep.subr.mxu0 0.0
    %886 = vmatpush1.msra.mxu0 0.0
    %887 = vmatprep.subr.mxu0 0.0
    %888 = vmatpush1.msra.mxu0 0.0
    %889 = vmatprep.subr.mxu0 0.0
    %890 = vmatpush1.msra.mxu0 0.0
    %891 = vmatprep.subr.mxu0 0.0
    %892 = vmatpush1.msra.mxu0 0.0
    %893 = vmatprep.subr.mxu0 0.0
    %894 = vmatpush1.msra.mxu0 0.0
    %895 = vmatprep.subr.mxu0 0.0
    %896 = vmatpush1.msra.mxu0 %v539
    %897 = vmatprep.subr.mxu0 0.0
    %898 = vmatpush1.msra.mxu0 %v538
    %899 = vmatprep.subr.mxu0 0.0
    %900 = vmatpush1.msra.mxu0 %v537
    %901 = vmatprep.subr.mxu0 0.0
    %902 = vmatpush1.msra.mxu0 %v536
    %903 = vmatprep.subr.mxu0 0.0
    %904 = vmatpush2.msra.mxu0 0.0
    %905 = vmatprep.subr.mxu0 0.0
    %906 = vmatpush2.msra.mxu0 0.0
    %907 = vmatprep.subr.mxu0 0.0
    %908 = vmatpush2.msra.mxu0 0.0
    %909 = vmatprep.subr.mxu0 0.0
    %910 = vmatpush2.msra.mxu0 0.0
    %911 = vmatprep.subr.mxu0 0.0
    %912 = vmatpush2.msra.mxu0 0.0
    %913 = vmatprep.subr.mxu0 0.0
    %914 = vmatpush2.msra.mxu0 0.0
    %915 = vmatprep.subr.mxu0 0.0
    %916 = vmatpush2.msra.mxu0 0.0
    %917 = vmatprep.subr.mxu0 0.0
    %918 = vmatpush2.msra.mxu0 0.0
    %919 = vmatprep.subr.mxu0 0.0
    %920 = vmatpush2.msra.mxu0 0.0
    %921 = vmatprep.subr.mxu0 0.0
    %922 = vmatpush2.msra.mxu0 0.0
    %923 = vmatprep.subr.mxu0 0.0
    %924 = vmatpush2.msra.mxu0 0.0
    %925 = vmatprep.subr.mxu0 0.0
    %926 = vmatpush2.msra.mxu0 0.0
    %927 = vmatprep.subr.mxu0 0.0
    %928 = vmatpush2.msra.mxu0 0.0
    %929 = vmatprep.subr.mxu0 0.0
    %930 = vmatpush2.msra.mxu0 0.0
    %931 = vmatprep.subr.mxu0 0.0
    %932 = vmatpush2.msra.mxu0 0.0
    %933 = vmatprep.subr.mxu0 0.0
    %934 = vmatpush2.msra.mxu0 0.0
    %935 = vmatprep.mubr.f32.mxu0 0.0
    %936 = vmatmul.mubr.f32.gmra.mxu0 %v824
    %v937 = vpop.f32.mrf.mxu0
    %v938 = vadd.f32 0.0, %v937
    %v939 = vpop.f32.mrf.mxu0
    %940 = vmatprep.mubr.f32.mxu0 0.0
    %941 = vmatmul.mubr.f32.gmra.mxu0 %v827
    %v942 = vpop.f32.mrf.mxu0
    %v943 = vadd.f32 0.0, %v942
    %v944 = vpop.f32.mrf.mxu0
    %945 = vmatprep.mubr.f32.mxu0 0.0
    %946 = vmatmul.mubr.f32.gmra.mxu0 %v830
    %v947 = vpop.f32.mrf.mxu0
    %v948 = vadd.f32 0.0, %v947
    %v949 = vpop.f32.mrf.mxu0
    %950 = vmatprep.mubr.f32.mxu0 0.0
    %951 = vmatmul.mubr.f32.gmra.mxu0 %v833
    %v952 = vpop.f32.mrf.mxu0
    %v953 = vadd.f32 0.0, %v952
    %v954 = vpop.f32.mrf.mxu0
    %955 = vmatprep.mubr.f32.mxu0 0.0
    %956 = vmatmul.mubr.f32.gmra.mxu0 %v836
    %v957 = vpop.f32.mrf.mxu0
    %v958 = vadd.f32 0.0, %v957
    %v959 = vpop.f32.mrf.mxu0
    %960 = vmatprep.mubr.f32.mxu0 0.0
    %961 = vmatmul.mubr.f32.gmra.mxu0 %v839
    %v962 = vpop.f32.mrf.mxu0
    %v963 = vadd.f32 0.0, %v962
    %v964 = vpop.f32.mrf.mxu0
    %965 = vmatprep.mubr.f32.mxu0 0.0
    %966 = vmatmul.mubr.f32.gmra.mxu0 %v842
    %v967 = vpop.f32.mrf.mxu0
    %v968 = vadd.f32 0.0, %v967
    %v969 = vpop.f32.mrf.mxu0
    %970 = vmatprep.mubr.f32.mxu0 0.0
    %971 = vmatmul.mubr.f32.gmra.mxu0 %v845
    %v972 = vpop.f32.mrf.mxu0
    %v973 = vadd.f32 0.0, %v972
    %v974 = vpop.f32.mrf.mxu0
    %975 = vmatprep.mubr.f32.mxu0 0.0
    %976 = vmatmul.mubr.f32.gmra.mxu0 %v848
    %v977 = vpop.f32.mrf.mxu0
    %v978 = vadd.f32 0.0, %v977
    %v979 = vpop.f32.mrf.mxu0
    %980 = vmatprep.mubr.f32.mxu0 0.0
    %981 = vmatmul.mubr.f32.gmra.mxu0 %v851
    %v982 = vpop.f32.mrf.mxu0
    %v983 = vadd.f32 0.0, %v982
    %v984 = vpop.f32.mrf.mxu0
    %985 = vmatprep.mubr.f32.mxu0 0.0
    %986 = vmatmul.mubr.f32.gmra.mxu0 %v854
    %v987 = vpop.f32.mrf.mxu0
    %v988 = vadd.f32 0.0, %v987
    %v989 = vpop.f32.mrf.mxu0
    %990 = vmatprep.mubr.f32.mxu0 0.0
    %991 = vmatmul.mubr.f32.gmra.mxu0 %v857
    %v992 = vpop.f32.mrf.mxu0
    %v993 = vadd.f32 0.0, %v992
    %v994 = vpop.f32.mrf.mxu0
    %995 = vmatprep.mubr.f32.mxu0 0.0
    %996 = vmatmul.mubr.f32.gmra.mxu0 %v860
    %v997 = vpop.f32.mrf.mxu0
    %v998 = vadd.f32 0.0, %v997
    %v999 = vpop.f32.mrf.mxu0
    %1000 = vmatprep.mubr.f32.mxu0 0.0
    %1001 = vmatmul.mubr.f32.gmra.mxu0 %v863
    %v1002 = vpop.f32.mrf.mxu0
    %v1003 = vadd.f32 0.0, %v1002
    %v1004 = vpop.f32.mrf.mxu0
    %1005 = vmatprep.mubr.f32.mxu0 0.0
    %1006 = vmatmul.mubr.f32.gmra.mxu0 %v866
    %v1007 = vpop.f32.mrf.mxu0
    %v1008 = vadd.f32 0.0, %v1007
    %v1009 = vpop.f32.mrf.mxu0
    %1010 = vmatprep.mubr.f32.mxu0 0.0
    %1011 = vmatmul.mubr.f32.gmra.mxu0 %v869
    %v1012 = vpop.f32.mrf.mxu0
    %v1013 = vadd.f32 0.0, %v1012
    %v1014 = vpop.f32.mrf.mxu0
    %1015 = vdwg.mxu0
    %v1016 = vlaneseq
    %v1017 = vand.u32 %v1016, 127
    %v1018 = vand.u32 %v1017, 3
    %v1019 = vcvt.s32.f32 %v1018
    %vm1020 = vcmp.eq.f32.partialorder %v1019, %v938
    %vm1021 = vcmp.eq.f32.partialorder %v1019, %v943
    %vm1022 = vcmp.eq.f32.partialorder %v1019, %v948
    %vm1023 = vcmp.eq.f32.partialorder %v1019, %v953
    %vm1024 = vcmp.eq.f32.partialorder %v1019, %v958
    %vm1025 = vcmp.eq.f32.partialorder %v1019, %v963
    %vm1026 = vcmp.eq.f32.partialorder %v1019, %v968
    %vm1027 = vcmp.eq.f32.partialorder %v1019, %v973
    %vm1028 = vcmp.eq.f32.partialorder %v1019, %v978
    %vm1029 = vcmp.eq.f32.partialorder %v1019, %v983
    %vm1030 = vcmp.eq.f32.partialorder %v1019, %v988
    %vm1031 = vcmp.eq.f32.partialorder %v1019, %v993
    %vm1032 = vcmp.eq.f32.partialorder %v1019, %v998
    %vm1033 = vcmp.eq.f32.partialorder %v1019, %v1003
    %vm1034 = vcmp.eq.f32.partialorder %v1019, %v1008
    %vm1035 = vcmp.eq.f32.partialorder %v1019, %v1013
    %v1036 = vsel %vm1020, %v548, %v544
    %v1037 = vsel %vm1021, %v548, %v544
    %v1038 = vsel %vm1022, %v548, %v544
    %v1039 = vsel %vm1023, %v548, %v544
    %v1040 = vsel %vm1024, %v548, %v544
    %v1041 = vsel %vm1025, %v548, %v544
    %v1042 = vsel %vm1026, %v548, %v544
    %v1043 = vsel %vm1027, %v548, %v544
    %v1044 = vsel %vm1028, %v548, %v544
    %v1045 = vsel %vm1029, %v548, %v544
    %v1046 = vsel %vm1030, %v548, %v544
    %v1047 = vsel %vm1031, %v548, %v544
    %v1048 = vsel %vm1032, %v548, %v544
    %v1049 = vsel %vm1033, %v548, %v544
    %v1050 = vsel %vm1034, %v548, %v544
    %v1051 = vsel %vm1035, %v548, %v544
    %v1052 = vsub.f32 %v774, %v118
    %v1053 = vsub.f32 %v775, %v119
    %v1054 = vsub.f32 %v776, %v120
    %v1055 = vsub.f32 %v777, %v121
    %v1056 = vsub.f32 %v778, %v122
    %v1057 = vsub.f32 %v779, %v123
    %v1058 = vsub.f32 %v780, %v124
    %v1059 = vsub.f32 %v781, %v125
    %v1060 = vsub.f32 %v782, %v126
    %v1061 = vsub.f32 %v783, %v127
    %v1062 = vsub.f32 %v784, %v128
    %v1063 = vsub.f32 %v785, %v129
    %v1064 = vsub.f32 %v786, %v130
    %v1065 = vsub.f32 %v787, %v131
    %v1066 = vsub.f32 %v788, %v132
    %v1067 = vsub.f32 %v789, %v133
    %v1068 = vmul.f32 %v1036, %v1052
    %v1069 = vmul.f32 %v1037, %v1053
    %v1070 = vmul.f32 %v1038, %v1054
    %v1071 = vmul.f32 %v1039, %v1055
    %v1072 = vmul.f32 %v1040, %v1056
    %v1073 = vmul.f32 %v1041, %v1057
    %v1074 = vmul.f32 %v1042, %v1058
    %v1075 = vmul.f32 %v1043, %v1059
    %v1076 = vmul.f32 %v1044, %v1060
    %v1077 = vmul.f32 %v1045, %v1061
    %v1078 = vmul.f32 %v1046, %v1062
    %v1079 = vmul.f32 %v1047, %v1063
    %v1080 = vmul.f32 %v1048, %v1064
    %v1081 = vmul.f32 %v1049, %v1065
    %v1082 = vmul.f32 %v1050, %v1066
    %v1083 = vmul.f32 %v1051, %v1067
    %1084 = vmatprep.subr.mxu0 0.0
    %1085 = vmatpush1.msra.mxu0 %v535
    %1086 = vmatprep.subr.mxu0 0.0
    %1087 = vmatpush1.msra.mxu0 %v534
    %1088 = vmatprep.subr.mxu0 0.0
    %1089 = vmatpush1.msra.mxu0 %v533
    %1090 = vmatprep.subr.mxu0 0.0
    %1091 = vmatpush1.msra.mxu0 %v532
    %1092 = vmatprep.subr.mxu0 0.0
    %1093 = vmatpush1.msra.mxu0 %v531
    %1094 = vmatprep.subr.mxu0 0.0
    %1095 = vmatpush1.msra.mxu0 %v530
    %1096 = vmatprep.subr.mxu0 0.0
    %1097 = vmatpush1.msra.mxu0 %v529
    %1098 = vmatprep.subr.mxu0 0.0
    %1099 = vmatpush1.msra.mxu0 %v528
    %1100 = vmatprep.subr.mxu0 0.0
    %1101 = vmatpush1.msra.mxu0 %v527
    %1102 = vmatprep.subr.mxu0 0.0
    %1103 = vmatpush1.msra.mxu0 %v526
    %1104 = vmatprep.subr.mxu0 0.0
    %1105 = vmatpush1.msra.mxu0 %v525
    %1106 = vmatprep.subr.mxu0 0.0
    %1107 = vmatpush1.msra.mxu0 %v524
    %1108 = vmatprep.subr.mxu0 0.0
    %1109 = vmatpush1.msra.mxu0 %v523
    %1110 = vmatprep.subr.mxu0 0.0
    %1111 = vmatpush1.msra.mxu0 %v522
    %1112 = vmatprep.subr.mxu0 0.0
    %1113 = vmatpush1.msra.mxu0 %v521
    %1114 = vmatprep.subr.mxu0 0.0
    %1115 = vmatpush1.msra.mxu0 %v520
    %1116 = vmatprep.subr.mxu0 0.0
    %1117 = vmatpush2.msra.mxu0 0.0
    %1118 = vmatprep.subr.mxu0 0.0
    %1119 = vmatpush2.msra.mxu0 0.0
    %1120 = vmatprep.subr.mxu0 0.0
    %1121 = vmatpush2.msra.mxu0 0.0
    %1122 = vmatprep.subr.mxu0 0.0
    %1123 = vmatpush2.msra.mxu0 0.0
    %1124 = vmatprep.subr.mxu0 0.0
    %1125 = vmatpush2.msra.mxu0 0.0
    %1126 = vmatprep.subr.mxu0 0.0
    %1127 = vmatpush2.msra.mxu0 0.0
    %1128 = vmatprep.subr.mxu0 0.0
    %1129 = vmatpush2.msra.mxu0 0.0
    %1130 = vmatprep.subr.mxu0 0.0
    %1131 = vmatpush2.msra.mxu0 0.0
    %1132 = vmatprep.subr.mxu0 0.0
    %1133 = vmatpush2.msra.mxu0 0.0
    %1134 = vmatprep.subr.mxu0 0.0
    %1135 = vmatpush2.msra.mxu0 0.0
    %1136 = vmatprep.subr.mxu0 0.0
    %1137 = vmatpush2.msra.mxu0 0.0
    %1138 = vmatprep.subr.mxu0 0.0
    %1139 = vmatpush2.msra.mxu0 0.0
    %1140 = vmatprep.subr.mxu0 0.0
    %1141 = vmatpush2.msra.mxu0 0.0
    %1142 = vmatprep.subr.mxu0 0.0
    %1143 = vmatpush2.msra.mxu0 0.0
    %1144 = vmatprep.subr.mxu0 0.0
    %1145 = vmatpush2.msra.mxu0 0.0
    %1146 = vmatprep.subr.mxu0 0.0
    %1147 = vmatpush2.msra.mxu0 0.0
    %1148 = vmatprep.mubr.f32.mxu0 0.0
    %1149 = vmatmul.mubr.f32.gmra.mxu0 %v1068
    %v1150 = vpop.f32.mrf.mxu0
    %v1151 = vadd.f32 0.0, %v1150
    %v1152 = vpop.f32.mrf.mxu0
    %1153 = vmatprep.mubr.f32.mxu0 0.0
    %1154 = vmatmul.mubr.f32.gmra.mxu0 %v1069
    %v1155 = vpop.f32.mrf.mxu0
    %v1156 = vadd.f32 0.0, %v1155
    %v1157 = vpop.f32.mrf.mxu0
    %1158 = vmatprep.mubr.f32.mxu0 0.0
    %1159 = vmatmul.mubr.f32.gmra.mxu0 %v1070
    %v1160 = vpop.f32.mrf.mxu0
    %v1161 = vadd.f32 0.0, %v1160
    %v1162 = vpop.f32.mrf.mxu0
    %1163 = vmatprep.mubr.f32.mxu0 0.0
    %1164 = vmatmul.mubr.f32.gmra.mxu0 %v1071
    %v1165 = vpop.f32.mrf.mxu0
    %v1166 = vadd.f32 0.0, %v1165
    %v1167 = vpop.f32.mrf.mxu0
    %1168 = vmatprep.mubr.f32.mxu0 0.0
    %1169 = vmatmul.mubr.f32.gmra.mxu0 %v1072
    %v1170 = vpop.f32.mrf.mxu0
    %v1171 = vadd.f32 0.0, %v1170
    %v1172 = vpop.f32.mrf.mxu0
    %1173 = vmatprep.mubr.f32.mxu0 0.0
    %1174 = vmatmul.mubr.f32.gmra.mxu0 %v1073
    %v1175 = vpop.f32.mrf.mxu0
    %v1176 = vadd.f32 0.0, %v1175
    %v1177 = vpop.f32.mrf.mxu0
    %1178 = vmatprep.mubr.f32.mxu0 0.0
    %1179 = vmatmul.mubr.f32.gmra.mxu0 %v1074
    %v1180 = vpop.f32.mrf.mxu0
    %v1181 = vadd.f32 0.0, %v1180
    %v1182 = vpop.f32.mrf.mxu0
    %1183 = vmatprep.mubr.f32.mxu0 0.0
    %1184 = vmatmul.mubr.f32.gmra.mxu0 %v1075
    %v1185 = vpop.f32.mrf.mxu0
    %v1186 = vadd.f32 0.0, %v1185
    %v1187 = vpop.f32.mrf.mxu0
    %1188 = vmatprep.mubr.f32.mxu0 0.0
    %1189 = vmatmul.mubr.f32.gmra.mxu0 %v1076
    %v1190 = vpop.f32.mrf.mxu0
    %v1191 = vadd.f32 0.0, %v1190
    %v1192 = vpop.f32.mrf.mxu0
    %1193 = vmatprep.mubr.f32.mxu0 0.0
    %1194 = vmatmul.mubr.f32.gmra.mxu0 %v1077
    %v1195 = vpop.f32.mrf.mxu0
    %v1196 = vadd.f32 0.0, %v1195
    %v1197 = vpop.f32.mrf.mxu0
    %1198 = vmatprep.mubr.f32.mxu0 0.0
    %1199 = vmatmul.mubr.f32.gmra.mxu0 %v1078
    %v1200 = vpop.f32.mrf.mxu0
    %v1201 = vadd.f32 0.0, %v1200
    %v1202 = vpop.f32.mrf.mxu0
    %1203 = vmatprep.mubr.f32.mxu0 0.0
    %1204 = vmatmul.mubr.f32.gmra.mxu0 %v1079
    %v1205 = vpop.f32.mrf.mxu0
    %v1206 = vadd.f32 0.0, %v1205
    %v1207 = vpop.f32.mrf.mxu0
    %1208 = vmatprep.mubr.f32.mxu0 0.0
    %1209 = vmatmul.mubr.f32.gmra.mxu0 %v1080
    %v1210 = vpop.f32.mrf.mxu0
    %v1211 = vadd.f32 0.0, %v1210
    %v1212 = vpop.f32.mrf.mxu0
    %1213 = vmatprep.mubr.f32.mxu0 0.0
    %1214 = vmatmul.mubr.f32.gmra.mxu0 %v1081
    %v1215 = vpop.f32.mrf.mxu0
    %v1216 = vadd.f32 0.0, %v1215
    %v1217 = vpop.f32.mrf.mxu0
    %1218 = vmatprep.mubr.f32.mxu0 0.0
    %1219 = vmatmul.mubr.f32.gmra.mxu0 %v1082
    %v1220 = vpop.f32.mrf.mxu0
    %v1221 = vadd.f32 0.0, %v1220
    %v1222 = vpop.f32.mrf.mxu0
    %1223 = vmatprep.mubr.f32.mxu0 0.0
    %1224 = vmatmul.mubr.f32.gmra.mxu0 %v1083
    %v1225 = vpop.f32.mrf.mxu0
    %v1226 = vadd.f32 0.0, %v1225
    %v1227 = vpop.f32.mrf.mxu0
    %1228 = vdwg.mxu0
    %v1229 = vsub.f32 0.0, %v1151
    %v1230 = vsub.f32 0.0, %v1156
    %v1231 = vsub.f32 0.0, %v1161
    %v1232 = vsub.f32 0.0, %v1166
    %v1233 = vsub.f32 0.0, %v1171
    %v1234 = vsub.f32 0.0, %v1176
    %v1235 = vsub.f32 0.0, %v1181
    %v1236 = vsub.f32 0.0, %v1186
    %v1237 = vsub.f32 0.0, %v1191
    %v1238 = vsub.f32 0.0, %v1196
    %v1239 = vsub.f32 0.0, %v1201
    %v1240 = vsub.f32 0.0, %v1206
    %v1241 = vsub.f32 0.0, %v1211
    %v1242 = vsub.f32 0.0, %v1216
    %v1243 = vsub.f32 0.0, %v1221
    %v1244 = vsub.f32 0.0, %v1226
    %v1245 = vmul.f32 %v1229, 1.442695
    %v1246 = vpow.pop %v1245
    %v1247 = vmul.f32 %v1230, 1.442695
    %v1248 = vpow.pop %v1247
    %v1249 = vmul.f32 %v1231, 1.442695
    %v1250 = vpow.pop %v1249
    %v1251 = vmul.f32 %v1232, 1.442695
    %v1252 = vpow.pop %v1251
    %v1253 = vmul.f32 %v1233, 1.442695
    %v1254 = vpow.pop %v1253
    %v1255 = vmul.f32 %v1234, 1.442695
    %v1256 = vpow.pop %v1255
    %v1257 = vmul.f32 %v1235, 1.442695
    %v1258 = vpow.pop %v1257
    %v1259 = vmul.f32 %v1236, 1.442695
    %v1260 = vpow.pop %v1259
    %v1261 = vmul.f32 %v1237, 1.442695
    %v1262 = vpow.pop %v1261
    %v1263 = vmul.f32 %v1238, 1.442695
    %v1264 = vpow.pop %v1263
    %v1265 = vmul.f32 %v1239, 1.442695
    %v1266 = vpow.pop %v1265
    %v1267 = vmul.f32 %v1240, 1.442695
    %v1268 = vpow.pop %v1267
    %v1269 = vmul.f32 %v1241, 1.442695
    %v1270 = vpow.pop %v1269
    %v1271 = vmul.f32 %v1242, 1.442695
    %v1272 = vpow.pop %v1271
    %v1273 = vmul.f32 %v1243, 1.442695
    %v1274 = vpow.pop %v1273
    %v1275 = vmul.f32 %v1244, 1.442695
    %v1276 = vpow.pop %v1275
    %v1277 = vsub.f32 1.0, %v1246
    %v1278 = vsub.f32 1.0, %v1248
    %v1279 = vsub.f32 1.0, %v1250
    %v1280 = vsub.f32 1.0, %v1252
    %v1281 = vsub.f32 1.0, %v1254
    %v1282 = vsub.f32 1.0, %v1256
    %v1283 = vsub.f32 1.0, %v1258
    %v1284 = vsub.f32 1.0, %v1260
    %v1285 = vsub.f32 1.0, %v1262
    %v1286 = vsub.f32 1.0, %v1264
    %v1287 = vsub.f32 1.0, %v1266
    %v1288 = vsub.f32 1.0, %v1268
    %v1289 = vsub.f32 1.0, %v1270
    %v1290 = vsub.f32 1.0, %v1272
    %v1291 = vsub.f32 1.0, %v1274
    %v1292 = vsub.f32 1.0, %v1276
    %v1293 = vmul.f32 %v1277, %v1277
    %v1294 = vmul.f32 %v1278, %v1278
    %v1295 = vmul.f32 %v1279, %v1279
    %v1296 = vmul.f32 %v1280, %v1280
    %v1297 = vmul.f32 %v1281, %v1281
    %v1298 = vmul.f32 %v1282, %v1282
    %v1299 = vmul.f32 %v1283, %v1283
    %v1300 = vmul.f32 %v1284, %v1284
    %v1301 = vmul.f32 %v1285, %v1285
    %v1302 = vmul.f32 %v1286, %v1286
    %v1303 = vmul.f32 %v1287, %v1287
    %v1304 = vmul.f32 %v1288, %v1288
    %v1305 = vmul.f32 %v1289, %v1289
    %v1306 = vmul.f32 %v1290, %v1290
    %v1307 = vmul.f32 %v1291, %v1291
    %v1308 = vmul.f32 %v1292, %v1292
    %v1309 = vmul.f32 %v1293, %v1151
    %v1310 = vmul.f32 %v1294, %v1156
    %v1311 = vmul.f32 %v1295, %v1161
    %v1312 = vmul.f32 %v1296, %v1166
    %v1313 = vmul.f32 %v1297, %v1171
    %v1314 = vmul.f32 %v1298, %v1176
    %v1315 = vmul.f32 %v1299, %v1181
    %v1316 = vmul.f32 %v1300, %v1186
    %v1317 = vmul.f32 %v1301, %v1191
    %v1318 = vmul.f32 %v1302, %v1196
    %v1319 = vmul.f32 %v1303, %v1201
    %v1320 = vmul.f32 %v1304, %v1206
    %v1321 = vmul.f32 %v1305, %v1211
    %v1322 = vmul.f32 %v1306, %v1216
    %v1323 = vmul.f32 %v1307, %v1221
    %v1324 = vmul.f32 %v1308, %v1226
    %s1325 = sld [smem:[#allocation4]]
    %s1326 = sadd.s32 0, 0
    %s1327 = smul.u32 %s1326, 128
    %v1328 = vlaneseq
    %v1329 = vshrl.u32 %v1328, 7
    %v1330 = vadd.s32 %v1329, 8
    %v1331 = vadd.s32 %v1329, 16
    %v1332 = vadd.s32 %v1329, 24
    %v1333 = vadd.s32 %v1329, 32
    %v1334 = vadd.s32 %v1329, 40
    %v1335 = vadd.s32 %v1329, 48
    %v1336 = vadd.s32 %v1329, 56
    %v1337 = vadd.s32 %v1329, 64
    %v1338 = vadd.s32 %v1329, 72
    %v1339 = vadd.s32 %v1329, 80
    %v1340 = vadd.s32 %v1329, 88
    %v1341 = vadd.s32 %v1329, 96
    %v1342 = vadd.s32 %v1329, 104
    %v1343 = vadd.s32 %v1329, 112
    %v1344 = vadd.s32 %v1329, 120
    %v1345 = vstv %s1327
    %v1346 = vadd.s32 %v1345, %v1329
    %v1347 = vadd.s32 %v1345, %v1330
    %v1348 = vadd.s32 %v1345, %v1331
    %v1349 = vadd.s32 %v1345, %v1332
    %v1350 = vadd.s32 %v1345, %v1333
    %v1351 = vadd.s32 %v1345, %v1334
    %v1352 = vadd.s32 %v1345, %v1335
    %v1353 = vadd.s32 %v1345, %v1336
    %v1354 = vadd.s32 %v1345, %v1337
    %v1355 = vadd.s32 %v1345, %v1338
    %v1356 = vadd.s32 %v1345, %v1339
    %v1357 = vadd.s32 %v1345, %v1340
    %v1358 = vadd.s32 %v1345, %v1341
    %v1359 = vadd.s32 %v1345, %v1342
    %v1360 = vadd.s32 %v1345, %v1343
    %v1361 = vadd.s32 %v1345, %v1344
    %v1362 = vstv %s1325
    %vm1363 = vcmp.lt.s32.totalorder %v1346, %v1362
    %vm1364 = vcmp.lt.s32.totalorder %v1347, %v1362
    %vm1365 = vcmp.lt.s32.totalorder %v1348, %v1362
    %vm1366 = vcmp.lt.s32.totalorder %v1349, %v1362
    %vm1367 = vcmp.lt.s32.totalorder %v1350, %v1362
    %vm1368 = vcmp.lt.s32.totalorder %v1351, %v1362
    %vm1369 = vcmp.lt.s32.totalorder %v1352, %v1362
    %vm1370 = vcmp.lt.s32.totalorder %v1353, %v1362
    %vm1371 = vcmp.lt.s32.totalorder %v1354, %v1362
    %vm1372 = vcmp.lt.s32.totalorder %v1355, %v1362
    %vm1373 = vcmp.lt.s32.totalorder %v1356, %v1362
    %vm1374 = vcmp.lt.s32.totalorder %v1357, %v1362
    %vm1375 = vcmp.lt.s32.totalorder %v1358, %v1362
    %vm1376 = vcmp.lt.s32.totalorder %v1359, %v1362
    %vm1377 = vcmp.lt.s32.totalorder %v1360, %v1362
    %vm1378 = vcmp.lt.s32.totalorder %v1361, %v1362
    %v1379 = vsel %vm1363, 1, 0
    %v1380 = vsel %vm1364, 1, 0
    %v1381 = vsel %vm1365, 1, 0
    %v1382 = vsel %vm1366, 1, 0
    %v1383 = vsel %vm1367, 1, 0
    %v1384 = vsel %vm1368, 1, 0
    %v1385 = vsel %vm1369, 1, 0
    %v1386 = vsel %vm1370, 1, 0
    %v1387 = vsel %vm1371, 1, 0
    %v1388 = vsel %vm1372, 1, 0
    %v1389 = vsel %vm1373, 1, 0
    %v1390 = vsel %vm1374, 1, 0
    %v1391 = vsel %vm1375, 1, 0
    %v1392 = vsel %vm1376, 1, 0
    %v1393 = vsel %vm1377, 1, 0
    %v1394 = vsel %vm1378, 1, 0
    %vm1395 = vcmp.eq.s32.totalorder %v1379, 1
    %vm1396 = vcmp.eq.s32.totalorder %v1380, 1
    %vm1397 = vcmp.eq.s32.totalorder %v1381, 1
    %vm1398 = vcmp.eq.s32.totalorder %v1382, 1
    %vm1399 = vcmp.eq.s32.totalorder %v1383, 1
    %vm1400 = vcmp.eq.s32.totalorder %v1384, 1
    %vm1401 = vcmp.eq.s32.totalorder %v1385, 1
    %vm1402 = vcmp.eq.s32.totalorder %v1386, 1
    %vm1403 = vcmp.eq.s32.totalorder %v1387, 1
    %vm1404 = vcmp.eq.s32.totalorder %v1388, 1
    %vm1405 = vcmp.eq.s32.totalorder %v1389, 1
    %vm1406 = vcmp.eq.s32.totalorder %v1390, 1
    %vm1407 = vcmp.eq.s32.totalorder %v1391, 1
    %vm1408 = vcmp.eq.s32.totalorder %v1392, 1
    %vm1409 = vcmp.eq.s32.totalorder %v1393, 1
    %vm1410 = vcmp.eq.s32.totalorder %v1394, 1
    %v1411 = vsel %vm1395, %v1309, 0.0
    %v1412 = vsel %vm1396, %v1310, 0.0
    %v1413 = vsel %vm1397, %v1311, 0.0
    %v1414 = vsel %vm1398, %v1312, 0.0
    %v1415 = vsel %vm1399, %v1313, 0.0
    %v1416 = vsel %vm1400, %v1314, 0.0
    %v1417 = vsel %vm1401, %v1315, 0.0
    %v1418 = vsel %vm1402, %v1316, 0.0
    %v1419 = vsel %vm1403, %v1317, 0.0
    %v1420 = vsel %vm1404, %v1318, 0.0
    %v1421 = vsel %vm1405, %v1319, 0.0
    %v1422 = vsel %vm1406, %v1320, 0.0
    %v1423 = vsel %vm1407, %v1321, 0.0
    %v1424 = vsel %vm1408, %v1322, 0.0
    %v1425 = vsel %vm1409, %v1323, 0.0
    %v1426 = vsel %vm1410, %v1324, 0.0
    %v1427 = vld [vmem:[#allocation2] sm:$0x1]
    %v1428 = vadd.f32 %v1411, %v1412
    %v1429 = vadd.f32 %v1428, %v1413
    %v1430 = vadd.f32 %v1429, %v1414
    %v1431 = vadd.f32 %v1430, %v1415
    %v1432 = vadd.f32 %v1431, %v1416
    %v1433 = vadd.f32 %v1432, %v1417
    %v1434 = vadd.f32 %v1433, %v1418
    %v1435 = vadd.f32 %v1434, %v1419
    %v1436 = vadd.f32 %v1435, %v1420
    %v1437 = vadd.f32 %v1436, %v1421
    %v1438 = vadd.f32 %v1437, %v1422
    %v1439 = vadd.f32 %v1438, %v1423
    %v1440 = vadd.f32 %v1439, %v1424
    %v1441 = vadd.f32 %v1440, %v1425
    %v1442 = vadd.f32 %v1441, %v1426
    %v1443 = vrot.slane %v1442, 4
    %v1444 = vadd.f32 %v1442, %v1443
    %v1445 = vrot.slane %v1444, 2
    %v1446 = vadd.f32 %v1444, %v1445
    %v1447 = vrot.slane %v1446, 1
    %v1448 = vadd.f32 %v1446, %v1447
    %v1449 = vadd.f32 %v1427, %v1448
    %1450 = vst [vmem:[#allocation2] sm:$0x1] %v1449
    // Predicated region
    $region30: #{tpu_custom_call.1} parent=1 // pred_check
      %p1451 = pneg %p113
    $region31: #{tpu_custom_call.1} parent=1 // pred_check_branch
      %1453 = sbr.rel (%p1451) target = $region33
    $region32: #{tpu_custom_call.1} parent=1 // pred_region
      %v1454 = vld [vmem:[#allocation2] sm:$0x1]
      %v1456 = vlaneseq
      %v1457 = vshrl.u32 %v1456, 7
      %v1458 = vsub.s32 0, %v1457
      %v1459 = vrot.slane %v1454, %v1458
      %1461 = vst [vmem:[#allocation10] sm:$0xff] %v1459
    $region33: #{tpu_custom_call.1} parent=1 // pred_fallthru
      _
    // Predicated region
    $region34: #{tpu_custom_call.1} parent=1 // pred_check
      _
    $region35: #{tpu_custom_call.1} parent=1 // pred_check_branch
      %1463 = sbr.rel (0) target = $region37
    $region36: #{tpu_custom_call.1} parent=1 // pred_region
      %s1465 = ssub.s32 128, 128
      %1466 = vsyncadd [#allocation7], %s1465
      %s1468 = sshll.u32 [#allocation10], 4
      %s1469 = int_to_ptr.vmem [resolvable:$true] %s1468
      %1471 = dma.vmem_to_hbm [thread:$0]  %s1469, 128, %s5, [#allocation7]
    $region37: #{tpu_custom_call.1} parent=1 // pred_fallthru
      _
    // Predicated region
    $region38: #{tpu_custom_call.1} parent=1 // pred_check
      _
    $region39: #{tpu_custom_call.1} parent=1 // pred_check_branch
      %1473 = sbr.rel (0) target = $region41
    $region40: #{tpu_custom_call.1} parent=1 // pred_region
      %1474 = dma.done [#allocation7], 128
    $region41: #{tpu_custom_call.1} parent=1 // pred_fallthru
      _
    %1475 = vsyncpa [#allocation6], 1
    %1476 = vsyncpa [#allocation9], 1
    %1477 = vsyncpa [#allocation7], 1

</llo_original>
